<compile_context>
chip_gen: v5e
topology: v5e:2x2
jax: 0.10.0
libtpu: 0.0.40
codegen_flags: <defaults>
</compile_context>

<pallas_src>
import functools

import jax
import jax.numpy as jnp
import numpy as np
from jax import lax
from jax.experimental import pallas as pl
from jax.experimental.pallas import tpu as pltpu


# ----------------------------------------------------------------------------
# Kernel: one grid step = (batch b, q-tile qi, kv-tile ki).
# Ref order: x_q, x_kv, [mask_q, mask_k], wq, wkv, wproj, bproj, out,
#            q_scr, m_scr, l_scr, acc_scr
# ----------------------------------------------------------------------------
def _masked_attention_kernel(*refs, num_heads, has_mask, compute_dtype, mask_value):
    if has_mask:
        (x_q_ref, x_kv_ref, mask_q_ref, mask_k_ref,
         wq_ref, wkv_ref, wproj_ref, bproj_ref, o_ref,
         q_scr, m_scr, l_scr, acc_scr) = refs
    else:
        (x_q_ref, x_kv_ref,
         wq_ref, wkv_ref, wproj_ref, bproj_ref, o_ref,
         q_scr, m_scr, l_scr, acc_scr) = refs
        mask_q_ref = mask_k_ref = None

    H = num_heads
    _, tq, C = x_q_ref.shape
    _, tk, _ = x_kv_ref.shape
    hd = C // H
    cd = compute_dtype

    qi = pl.program_id(1)
    ki = pl.program_id(2)
    nk = pl.num_programs(2)

    # ---- init per (b, q-tile): ONE lane-dense Q projection + running stats. ----
    @pl.when(ki == 0)
    def _init():
        xq = x_q_ref[0]                                              # (tq, C)
        q2 = jnp.dot(xq, wq_ref[...],                                # scale folded in wq
                     preferred_element_type=jnp.float32)             # (tq, C) f32
        for h in range(H):                                            # split heads once
            q_scr[h] = q2[:, h * hd:(h + 1) * hd].astype(cd)
        m_scr[...] = jnp.full(m_scr.shape, -jnp.inf, jnp.float32)
        l_scr[...] = jnp.zeros(l_scr.shape, jnp.float32)
        acc_scr[...] = jnp.zeros(acc_scr.shape, jnp.float32)

    # ---- K/V projection for this kv-tile: ONE lane-dense (tk, C) @ (C, 2C). ----
    xkv = x_kv_ref[0]                                                 # (tk, C)
    kv2 = jnp.dot(xkv, wkv_ref[...],
                  preferred_element_type=jnp.float32)                 # (tk, 2C) f32

    # ---- pair mask for this (q-tile, kv-tile), built in-kernel from (B, N). ----
    if has_mask:
        q_start = pl.multiple_of(qi * tq, tq)
        k_start = pl.multiple_of(ki * tk, tk)
        mq = mask_q_ref[0, pl.ds(q_start, tq), :]                     # (tq, 1)
        mk = mask_k_ref[0, :, pl.ds(k_start, tk)]                     # (1, tk)
        pair = (mq > 0.5) & (mk > 0.5)                                # (tq, tk) bool
    else:
        pair = None

    # ---- online softmax, per head (static unroll; same MXU shapes as a batched
    #      einsum, since head-batching does not deepen the hd contraction). ----
    for h in range(H):
        kh = kv2[:, h * hd:(h + 1) * hd].astype(cd)                   # (tk, hd)
        vh = kv2[:, C + h * hd:C + (h + 1) * hd].astype(cd)           # (tk, hd)
        s = lax.dot_general(q_scr[h], kh, (((1,), (1,)), ((), ())),
                            preferred_element_type=jnp.float32)       # (tq, tk) f32
        if has_mask:
            s = jnp.where(pair, s, mask_value)      # masked_fill(~mask, -f32.max)
        m_prev = m_scr[h]                                             # (tq, 1)
        m_new = jnp.maximum(m_prev, jnp.max(s, axis=-1, keepdims=True))
        alpha = jnp.exp(m_prev - m_new)
        p = jnp.exp(s - m_new)
        l_scr[h] = alpha * l_scr[h] + jnp.sum(p, axis=-1, keepdims=True)
        acc_scr[h] = alpha * acc_scr[h] + jnp.dot(
            p.astype(cd), vh, preferred_element_type=jnp.float32)
        m_scr[h] = m_new
    # attn_drop: identity at inference (Dropout in eval mode).

    # ---- finalize: normalize, concat heads lane-adjacent, ONE output matmul. ----
    @pl.when(ki == nk - 1)
    def _finalize():
        ctx = jnp.concatenate(
            [acc_scr[h] * pl.reciprocal(l_scr[h], approx=True) for h in range(H)],
            axis=-1)                                                  # (tq, C) f32
        out = jnp.dot(ctx.astype(cd), wproj_ref[...],
                      preferred_element_type=jnp.float32) + bproj_ref[...]
        # proj_drop: identity at inference.
        o_ref[0] = out.astype(o_ref.dtype)


# ----------------------------------------------------------------------------
# One-time weight packing (hoisted out of the per-call path; cache/reuse it).
# torch-equivalent layout: y = x @ W (+ b); qkv columns ordered [q | k | v],
# each block ordered head-major then head_dim (matches the torch reshape).
# ----------------------------------------------------------------------------
def pack_masked_attention_params(params, dim, num_heads, compute_dtype=jnp.bfloat16):
    C, H = dim, num_heads
    hd = C // H
    scale = float(hd) ** -0.5
    c_out = C if C % 128 == 0 else ((C + 127) // 128) * 128          # lane-dense output

    wqkv = params["wqkv"]                                             # (C, 3C)
    wq = (wqkv[:, :C] * scale).astype(compute_dtype)                  # scale folded (f32 math)
    wkv = wqkv[:, C:].astype(compute_dtype)                           # (C, 2C) = [Wk | Wv]

    wproj = params["wproj"]                                           # (C, C)
    if c_out != C:
        wproj = jnp.pad(wproj, ((0, 0), (0, c_out - C)))
    bproj = params["bproj"]
    if c_out != C:
        bproj = jnp.pad(bproj, (0, c_out - C))

    return dict(
        wq=wq, wkv=wkv,
        wproj=wproj.astype(compute_dtype),
        bproj=bproj.reshape(1, c_out).astype(jnp.float32),
        dim=C, num_heads=H, c_out=c_out, compute_dtype=compute_dtype,
    )


def _pick_tile(n, preferred=256):
    # >=256 fills the v6e/v7x MXU; on v7x consider 128 if VMEM-tight.
    if n <= preferred:
        return n
    for t in (preferred, 128, 64, 32, 16, 8):
        if n % t == 0:
            return t
    return n


def _vmem_limit_bytes(N, C, H, tq, tk, c_out, cd, out_dtype, has_mask):
    cb = jnp.dtype(cd).itemsize
    ob = jnp.dtype(out_dtype).itemsize
    hd = C // H
    dbuf = 2                                                  # pipelined double buffers
    stream = dbuf * ((tq * C + tk * C) * cb + tq * c_out * ob)
    if has_mask:
        stream += dbuf * 2 * N * 4
    weights = (C * C + C * 2 * C + C * c_out) * cb + c_out * 4
    scratch = H * tq * hd * cb + H * tq * (1 + 1 + hd) * 4
    need = stream + weights + scratch
    # Headroom for layout padding / epilogue temporaries; cap below v7x's 64 MiB.
    return int(min(max(2 * need + (2 << 20), 16 << 20), 64 << 20))


# ----------------------------------------------------------------------------
# Wrapper: single pallas_call over grid (B, q-tiles, kv-tiles).
# ----------------------------------------------------------------------------
def masked_attention(x, packed, mask=None, *, q_tile=None, kv_tile=None, out_dtype=None):
    B, N, C = x.shape
    assert C == packed["dim"]
    H = packed["num_heads"]
    hd = C // H
    c_out = packed["c_out"]
    cd = packed["compute_dtype"]
    out_dtype = out_dtype or x.dtype

    tq = q_tile or _pick_tile(N)
    tk = kv_tile or _pick_tile(N)
    assert N % tq == 0 and N % tk == 0, "tile sizes must divide N"
    nq, nk = N // tq, N // tk

    x_c = x.astype(cd)
    has_mask = mask is not None

    args = [x_c, x_c]
    in_specs = [
        pl.BlockSpec((1, tq, C), lambda b, qi, ki: (b, qi, 0)),   # q rows
        pl.BlockSpec((1, tk, C), lambda b, qi, ki: (b, ki, 0)),   # kv rows
    ]
    if has_mask:
        mf = mask.astype(jnp.float32)
        args += [mf[:, :, None], mf[:, None, :]]                  # (B,N,1) / (B,1,N)
        in_specs += [
            pl.BlockSpec((1, N, 1), lambda b, qi, ki: (b, 0, 0)),
            pl.BlockSpec((1, 1, N), lambda b, qi, ki: (b, 0, 0)),
        ]
    args += [packed["wq"], packed["wkv"], packed["wproj"], packed["bproj"]]
    in_specs += [                                                 # constant index_map ->
        pl.BlockSpec((C, C), lambda b, qi, ki: (0, 0)),           # weights stay resident
        pl.BlockSpec((C, 2 * C), lambda b, qi, ki: (0, 0)),
        pl.BlockSpec((C, c_out), lambda b, qi, ki: (0, 0)),
        pl.BlockSpec((1, c_out), lambda b, qi, ki: (0, 0)),
    ]

    kernel = functools.partial(
        _masked_attention_kernel,
        num_heads=H, has_mask=has_mask, compute_dtype=cd,
        mask_value=float(-np.finfo(np.float32).max),
    )

    out = pl.pallas_call(
        kernel,
        out_shape=jax.ShapeDtypeStruct((B, N, c_out), out_dtype),
        grid=(B, nq, nk),
        in_specs=in_specs,
        out_specs=pl.BlockSpec((1, tq, c_out), lambda b, qi, ki: (b, qi, 0)),
        scratch_shapes=[
            pltpu.VMEM((H, tq, hd), cd),            # cached per-head Q for this q-tile
            pltpu.VMEM((H, tq, 1), jnp.float32),    # running max m
            pltpu.VMEM((H, tq, 1), jnp.float32),    # running denom l
            pltpu.VMEM((H, tq, hd), jnp.float32),   # running context acc
        ],
        compiler_params=pltpu.CompilerParams(
            dimension_semantics=("parallel", "parallel", "arbitrary"),
            vmem_limit_bytes=_vmem_limit_bytes(N, C, H, tq, tk, c_out, cd,
                                               out_dtype, has_mask),
        ),
    )(*args)
    return out[:, :, :C] if c_out != C else out


# ----------------------------------------------------------------------------
# Deterministic parameters + pure-JAX reference mirroring the PyTorch forward
# (eval mode) for validation.
# ----------------------------------------------------------------------------
def init_params(key, dim):
    k1, k2, k3 = jax.random.split(key, 3)
    std = dim ** -0.5
    return dict(
        wqkv=(std * jax.random.normal(k1, (dim, 3 * dim))).astype(jnp.float32),
        wproj=(std * jax.random.normal(k2, (dim, dim))).astype(jnp.float32),
        bproj=(0.1 * jax.random.normal(k3, (dim,))).astype(jnp.float32),
    )


def ref_masked_attention(x, params, num_heads, mask=None):
    B, N, C = x.shape
    H, hd = num_heads, C // num_heads
    qkv = (x @ params["wqkv"]).reshape(B, N, 3, H, hd).transpose(2, 0, 3, 1, 4)
    q, k, v = qkv[0], qkv[1], qkv[2]                         # (B, H, N, hd)
    attn = jnp.einsum("bhnd,bhmd->bhnm", q, k) * (hd ** -0.5)
    if mask is not None:
        pair = mask[:, None, :] & mask[:, :, None]           # (B, N, N)
        attn = jnp.where(pair[:, None, :, :], attn, -jnp.finfo(attn.dtype).max)
    attn = jax.nn.softmax(attn, axis=-1)
    ctx = jnp.einsum("bhnm,bhmd->bhnd", attn, v).transpose(0, 2, 1, 3).reshape(B, N, C)
    return ctx @ params["wproj"] + params["bproj"]


if __name__ == "__main__":
    B, N, C, H = 2, 8, 32, 4

    key = jax.random.PRNGKey(0)
    pk, xk, mk, xk2, mk2 = jax.random.split(key, 5)
    params = init_params(pk, C)
    x = jax.random.normal(xk, (B, N, C), jnp.float32)
    mask = jax.random.bernoulli(mk, 0.7, (B, N))
    mask = mask.at[:, 0].set(True)                           # keep >=1 key per row

    # Pack once ("load time"); reuse across calls.
    packed_f32 = pack_masked_attention_params(params, C, H, compute_dtype=jnp.float32)
    packed_bf16 = pack_masked_attention_params(params, C, H, compute_dtype=jnp.bfloat16)

    # f32 matmuls, no mask (single-tile path).
    out = jax.block_until_ready(masked_attention(x, packed_f32))
    ref = ref_masked_attention(x, params, H)
    assert np.allclose(np.asarray(out), np.asarray(ref), atol=1e-2, rtol=1e-2), \
        "f32 unmasked mismatch"

    # f32 matmuls, with mask.
    out_m = jax.block_until_ready(masked_attention(x, packed_f32, mask=mask))
    ref_m = ref_masked_attention(x, params, H, mask=mask)
    assert np.allclose(np.asarray(out_m), np.asarray(ref_m), atol=1e-2, rtol=1e-2), \
        "f32 masked mismatch"

    # bf16 matmul inputs (default / MXU-native), f32 accumulation — looser tolerance.
    out_bf = jax.block_until_ready(masked_attention(x, packed_bf16, mask=mask))
    assert np.allclose(np.asarray(out_bf), np.asarray(ref_m), atol=5e-2, rtol=5e-2), \
        "bf16 masked mismatch"

    # Multi-tile flash path: 2 q-tiles x 2 kv-tiles exercises the online-softmax
    # accumulation across the "arbitrary" kv axis.
    N2 = 16
    x2 = jax.random.normal(xk2, (B, N2, C), jnp.float32)
    mask2 = jax.random.bernoulli(mk2, 0.6, (B, N2))
    mask2 = mask2.at[:, 0].set(True)
    out_t = jax.block_until_ready(
        masked_attention(x2, packed_f32, mask=mask2, q_tile=8, kv_tile=8))
    ref_t = ref_masked_attention(x2, params, H, mask=mask2)
    assert np.allclose(np.asarray(out_t), np.asarray(ref_t), atol=1e-2, rtol=1e-2), \
        "f32 masked multi-tile mismatch"

    print("KERNEL_OK")
</pallas_src>

<mosaic_0001>
module attributes {stable_mosaic.version = 11 : i64} {
  func.func @_masked_attention_kernel(%arg0: i32, %arg1: i32, %arg2: i32, %arg3: memref<1x8x32xf32, #tpu.memory_space<vmem>>, %arg4: memref<1x8x32xf32, #tpu.memory_space<vmem>>, %arg5: memref<32x32xf32, #tpu.memory_space<vmem>>, %arg6: memref<32x64xf32, #tpu.memory_space<vmem>>, %arg7: memref<32x128xf32, #tpu.memory_space<vmem>>, %arg8: memref<1x128xf32, #tpu.memory_space<vmem>>, %arg9: memref<1x8x128xf32, #tpu.memory_space<vmem>>, %arg10: memref<4x8x8xf32, #tpu.memory_space<vmem>>, %arg11: memref<4x8x1xf32, #tpu.memory_space<vmem>>, %arg12: memref<4x8x1xf32, #tpu.memory_space<vmem>>, %arg13: memref<4x8x8xf32, #tpu.memory_space<vmem>>) attributes {dimension_semantics = [#tpu.dimension_semantics<parallel>, #tpu.dimension_semantics<parallel>, #tpu.dimension_semantics<arbitrary>], iteration_bounds = array<i64: 2, 1, 1>, scalar_prefetch = 0 : i64, scratch_operands = 4 : i64, tpu.core_type = #tpu.core_type<tc>, window_params = [{transform_indices = @transform_0, window_bounds = array<i64: 1, 8, 32>}, {transform_indices = @transform_1, window_bounds = array<i64: 1, 8, 32>}, {pipeline_mode = #tpu.pipeline_mode<synchronous>, transform_indices = @transform_2, window_bounds = array<i64: 32, 32>}, {pipeline_mode = #tpu.pipeline_mode<synchronous>, transform_indices = @transform_3, window_bounds = array<i64: 32, 64>}, {pipeline_mode = #tpu.pipeline_mode<synchronous>, transform_indices = @transform_4, window_bounds = array<i64: 32, 128>}, {pipeline_mode = #tpu.pipeline_mode<synchronous>, transform_indices = @transform_5, window_bounds = array<i64: 1, 128>}, {transform_indices = @transform_6, window_bounds = array<i64: 1, 8, 128>}]} {
    %c0_i32 = arith.constant 0 : i32
    %0 = arith.cmpi eq, %arg2, %c0_i32 : i32
    %1 = arith.extui %0 : i1 to i32
    %c0_i32_0 = arith.constant 0 : i32
    %2 = arith.cmpi ne, %1, %c0_i32_0 : i32
    scf.if %2 {
      %c0_104 = arith.constant 0 : index
      %c0_105 = arith.constant 0 : index
      %c0_106 = arith.constant 0 : index
      %154 = vector.load %arg3[%c0_104, %c0_105, %c0_106] : memref<1x8x32xf32, #tpu.memory_space<vmem>>, vector<1x8x32xf32>
      %155 = vector.shape_cast %154 : vector<1x8x32xf32> to vector<8x32xf32>
      %c0_107 = arith.constant 0 : index
      %c0_108 = arith.constant 0 : index
      %156 = vector.load %arg5[%c0_107, %c0_108] : memref<32x32xf32, #tpu.memory_space<vmem>>, vector<32x32xf32>
      %cst_109 = arith.constant dense<0.000000e+00> : vector<8x32xf32>
      %157 = tpu.matmul %155, %156, %cst_109 {dimension_numbers = #tpu.dot_dimension_numbers<[1], [0], [0], [1], [0, 0, 1, 1], [], []>} : vector<8x32xf32>, vector<32x32xf32>, vector<8x32xf32> -> vector<8x32xf32>
      %158 = vector.extract_strided_slice %157 {offsets = [0, 0], sizes = [8, 8], strides = [1, 1]} : vector<8x32xf32> to vector<8x8xf32>
      %c0_110 = arith.constant 0 : index
      %c0_111 = arith.constant 0 : index
      %c0_112 = arith.constant 0 : index
      %159 = vector.load %arg10[%c0_110, %c0_111, %c0_112] : memref<4x8x8xf32, #tpu.memory_space<vmem>>, vector<1x8x8xf32>
      %160 = vector.shape_cast %159 : vector<1x8x8xf32> to vector<8x8xf32>
      %161 = vector.shape_cast %158 : vector<8x8xf32> to vector<1x8x8xf32>
      tpu.vector_store %arg10[%c0_110, %c0_111, %c0_112], %161 {strides = array<i32>} : memref<4x8x8xf32, #tpu.memory_space<vmem>>, vector<1x8x8xf32>,
      %162 = vector.extract_strided_slice %157 {offsets = [0, 8], sizes = [8, 8], strides = [1, 1]} : vector<8x32xf32> to vector<8x8xf32>
      %c1_113 = arith.constant 1 : index
      %c0_114 = arith.constant 0 : index
      %c0_115 = arith.constant 0 : index
      %163 = vector.load %arg10[%c1_113, %c0_114, %c0_115] : memref<4x8x8xf32, #tpu.memory_space<vmem>>, vector<1x8x8xf32>
      %164 = vector.shape_cast %163 : vector<1x8x8xf32> to vector<8x8xf32>
      %165 = vector.shape_cast %162 : vector<8x8xf32> to vector<1x8x8xf32>
      tpu.vector_store %arg10[%c1_113, %c0_114, %c0_115], %165 {strides = array<i32>} : memref<4x8x8xf32, #tpu.memory_space<vmem>>, vector<1x8x8xf32>,
      %166 = vector.extract_strided_slice %157 {offsets = [0, 16], sizes = [8, 8], strides = [1, 1]} : vector<8x32xf32> to vector<8x8xf32>
      %c2_116 = arith.constant 2 : index
      %c0_117 = arith.constant 0 : index
      %c0_118 = arith.constant 0 : index
      %167 = vector.load %arg10[%c2_116, %c0_117, %c0_118] : memref<4x8x8xf32, #tpu.memory_space<vmem>>, vector<1x8x8xf32>
      %168 = vector.shape_cast %167 : vector<1x8x8xf32> to vector<8x8xf32>
      %169 = vector.shape_cast %166 : vector<8x8xf32> to vector<1x8x8xf32>
      tpu.vector_store %arg10[%c2_116, %c0_117, %c0_118], %169 {strides = array<i32>} : memref<4x8x8xf32, #tpu.memory_space<vmem>>, vector<1x8x8xf32>,
      %170 = vector.extract_strided_slice %157 {offsets = [0, 24], sizes = [8, 8], strides = [1, 1]} : vector<8x32xf32> to vector<8x8xf32>
      %c3_119 = arith.constant 3 : index
      %c0_120 = arith.constant 0 : index
      %c0_121 = arith.constant 0 : index
      %171 = vector.load %arg10[%c3_119, %c0_120, %c0_121] : memref<4x8x8xf32, #tpu.memory_space<vmem>>, vector<1x8x8xf32>
      %172 = vector.shape_cast %171 : vector<1x8x8xf32> to vector<8x8xf32>
      %173 = vector.shape_cast %170 : vector<8x8xf32> to vector<1x8x8xf32>
      tpu.vector_store %arg10[%c3_119, %c0_120, %c0_121], %173 {strides = array<i32>} : memref<4x8x8xf32, #tpu.memory_space<vmem>>, vector<1x8x8xf32>,
      %cst_122 = arith.constant 0xFF800000 : f32
      %174 = vector.broadcast %cst_122 : f32 to vector<4x8x1xf32>
      %c0_123 = arith.constant 0 : index
      %c0_124 = arith.constant 0 : index
      %c0_125 = arith.constant 0 : index
      %175 = vector.load %arg11[%c0_123, %c0_124, %c0_125] : memref<4x8x1xf32, #tpu.memory_space<vmem>>, vector<4x8x1xf32>
      tpu.vector_store %arg11[%c0_123, %c0_124, %c0_125], %174 {strides = array<i32>} : memref<4x8x1xf32, #tpu.memory_space<vmem>>, vector<4x8x1xf32>,
      %cst_126 = arith.constant 0.000000e+00 : f32
      %176 = vector.broadcast %cst_126 : f32 to vector<4x8x1xf32>
      %c0_127 = arith.constant 0 : index
      %c0_128 = arith.constant 0 : index
      %c0_129 = arith.constant 0 : index
      %177 = vector.load %arg12[%c0_127, %c0_128, %c0_129] : memref<4x8x1xf32, #tpu.memory_space<vmem>>, vector<4x8x1xf32>
      tpu.vector_store %arg12[%c0_127, %c0_128, %c0_129], %176 {strides = array<i32>} : memref<4x8x1xf32, #tpu.memory_space<vmem>>, vector<4x8x1xf32>,
      %cst_130 = arith.constant 0.000000e+00 : f32
      %178 = vector.broadcast %cst_130 : f32 to vector<4x8x8xf32>
      %c0_131 = arith.constant 0 : index
      %c0_132 = arith.constant 0 : index
      %c0_133 = arith.constant 0 : index
      %179 = vector.load %arg13[%c0_131, %c0_132, %c0_133] : memref<4x8x8xf32, #tpu.memory_space<vmem>>, vector<4x8x8xf32>
      tpu.vector_store %arg13[%c0_131, %c0_132, %c0_133], %178 {strides = array<i32>} : memref<4x8x8xf32, #tpu.memory_space<vmem>>, vector<4x8x8xf32>,
    } else {
    }
    %c0 = arith.constant 0 : index
    %c0_1 = arith.constant 0 : index
    %c0_2 = arith.constant 0 : index
    %3 = vector.load %arg4[%c0, %c0_1, %c0_2] : memref<1x8x32xf32, #tpu.memory_space<vmem>>, vector<1x8x32xf32>
    %4 = vector.shape_cast %3 : vector<1x8x32xf32> to vector<8x32xf32>
    %c0_3 = arith.constant 0 : index
    %c0_4 = arith.constant 0 : index
    %5 = vector.load %arg6[%c0_3, %c0_4] : memref<32x64xf32, #tpu.memory_space<vmem>>, vector<32x64xf32>
    %cst = arith.constant dense<0.000000e+00> : vector<8x64xf32>
    %6 = tpu.matmul %4, %5, %cst {dimension_numbers = #tpu.dot_dimension_numbers<[1], [0], [0], [1], [0, 0, 1, 1], [], []>} : vector<8x32xf32>, vector<32x64xf32>, vector<8x64xf32> -> vector<8x64xf32>
    %7 = vector.extract_strided_slice %6 {offsets = [0, 0], sizes = [8, 8], strides = [1, 1]} : vector<8x64xf32> to vector<8x8xf32>
    %8 = vector.extract_strided_slice %6 {offsets = [0, 32], sizes = [8, 8], strides = [1, 1]} : vector<8x64xf32> to vector<8x8xf32>
    %c0_5 = arith.constant 0 : index
    %c0_6 = arith.constant 0 : index
    %c0_7 = arith.constant 0 : index
    %9 = vector.load %arg10[%c0_5, %c0_6, %c0_7] : memref<4x8x8xf32, #tpu.memory_space<vmem>>, vector<1x8x8xf32>
    %10 = vector.shape_cast %9 : vector<1x8x8xf32> to vector<8x8xf32>
    %cst_8 = arith.constant dense<0.000000e+00> : vector<8x8xf32>
    %11 = tpu.matmul %10, %7, %cst_8 {dimension_numbers = #tpu.dot_dimension_numbers<[1], [1], [0], [0], [0, 0, 1, 0], [], []>} : vector<8x8xf32>, vector<8x8xf32>, vector<8x8xf32> -> vector<8x8xf32>
    %c0_9 = arith.constant 0 : index
    %c0_10 = arith.constant 0 : index
    %c0_11 = arith.constant 0 : index
    %12 = vector.load %arg11[%c0_9, %c0_10, %c0_11] : memref<4x8x1xf32, #tpu.memory_space<vmem>>, vector<1x8x1xf32>
    %13 = vector.shape_cast %12 : vector<1x8x1xf32> to vector<8x1xf32>
    %cst_12 = arith.constant dense<0xFF800000> : vector<8xf32>
    %14 = vector.multi_reduction <maximumf>, %11, %cst_12 [1] : vector<8x8xf32> to vector<8xf32>
    %15 = vector.shape_cast %14 : vector<8xf32> to vector<8x1xf32>
    %16 = arith.maximumf %13, %15 : vector<8x1xf32>
    %17 = arith.subf %13, %16 : vector<8x1xf32>
    %18 = math.exp %17 : vector<8x1xf32>
    %19 = vector.broadcast %16 : vector<8x1xf32> to vector<8x8xf32>
    %20 = arith.subf %11, %19 : vector<8x8xf32>
    %21 = math.exp %20 : vector<8x8xf32>
    %c0_13 = arith.constant 0 : index
    %c0_14 = arith.constant 0 : index
    %c0_15 = arith.constant 0 : index
    %22 = vector.load %arg12[%c0_13, %c0_14, %c0_15] : memref<4x8x1xf32, #tpu.memory_space<vmem>>, vector<1x8x1xf32>
    %23 = vector.shape_cast %22 : vector<1x8x1xf32> to vector<8x1xf32>
    %24 = arith.mulf %18, %23 : vector<8x1xf32>
    %cst_16 = arith.constant dense<0.000000e+00> : vector<8xf32>
    %25 = vector.multi_reduction <add>, %21, %cst_16 [1] : vector<8x8xf32> to vector<8xf32>
    %26 = vector.shape_cast %25 : vector<8xf32> to vector<8x1xf32>
    %27 = arith.addf %24, %26 : vector<8x1xf32>
    %c0_17 = arith.constant 0 : index
    %c0_18 = arith.constant 0 : index
    %c0_19 = arith.constant 0 : index
    %28 = vector.load %arg12[%c0_17, %c0_18, %c0_19] : memref<4x8x1xf32, #tpu.memory_space<vmem>>, vector<1x8x1xf32>
    %29 = vector.shape_cast %28 : vector<1x8x1xf32> to vector<8x1xf32>
    %30 = vector.shape_cast %27 : vector<8x1xf32> to vector<1x8x1xf32>
    tpu.vector_store %arg12[%c0_17, %c0_18, %c0_19], %30 {strides = array<i32>} : memref<4x8x1xf32, #tpu.memory_space<vmem>>, vector<1x8x1xf32>,
    %c0_20 = arith.constant 0 : index
    %c0_21 = arith.constant 0 : index
    %c0_22 = arith.constant 0 : index
    %31 = vector.load %arg13[%c0_20, %c0_21, %c0_22] : memref<4x8x8xf32, #tpu.memory_space<vmem>>, vector<1x8x8xf32>
    %32 = vector.shape_cast %31 : vector<1x8x8xf32> to vector<8x8xf32>
    %33 = vector.broadcast %18 : vector<8x1xf32> to vector<8x8xf32>
    %34 = arith.mulf %33, %32 : vector<8x8xf32>
    %cst_23 = arith.constant dense<0.000000e+00> : vector<8x8xf32>
    %35 = tpu.matmul %21, %8, %cst_23 {dimension_numbers = #tpu.dot_dimension_numbers<[1], [0], [0], [1], [0, 0, 1, 1], [], []>} : vector<8x8xf32>, vector<8x8xf32>, vector<8x8xf32> -> vector<8x8xf32>
    %36 = arith.addf %34, %35 : vector<8x8xf32>
    %c0_24 = arith.constant 0 : index
    %c0_25 = arith.constant 0 : index
    %c0_26 = arith.constant 0 : index
    %37 = vector.load %arg13[%c0_24, %c0_25, %c0_26] : memref<4x8x8xf32, #tpu.memory_space<vmem>>, vector<1x8x8xf32>
    %38 = vector.shape_cast %37 : vector<1x8x8xf32> to vector<8x8xf32>
    %39 = vector.shape_cast %36 : vector<8x8xf32> to vector<1x8x8xf32>
    tpu.vector_store %arg13[%c0_24, %c0_25, %c0_26], %39 {strides = array<i32>} : memref<4x8x8xf32, #tpu.memory_space<vmem>>, vector<1x8x8xf32>,
    %c0_27 = arith.constant 0 : index
    %c0_28 = arith.constant 0 : index
    %c0_29 = arith.constant 0 : index
    %40 = vector.load %arg11[%c0_27, %c0_28, %c0_29] : memref<4x8x1xf32, #tpu.memory_space<vmem>>, vector<1x8x1xf32>
    %41 = vector.shape_cast %40 : vector<1x8x1xf32> to vector<8x1xf32>
    %42 = vector.shape_cast %16 : vector<8x1xf32> to vector<1x8x1xf32>
    tpu.vector_store %arg11[%c0_27, %c0_28, %c0_29], %42 {strides = array<i32>} : memref<4x8x1xf32, #tpu.memory_space<vmem>>, vector<1x8x1xf32>,
    %43 = vector.extract_strided_slice %6 {offsets = [0, 8], sizes = [8, 8], strides = [1, 1]} : vector<8x64xf32> to vector<8x8xf32>
    %44 = vector.extract_strided_slice %6 {offsets = [0, 40], sizes = [8, 8], strides = [1, 1]} : vector<8x64xf32> to vector<8x8xf32>
    %c1 = arith.constant 1 : index
    %c0_30 = arith.constant 0 : index
    %c0_31 = arith.constant 0 : index
    %45 = vector.load %arg10[%c1, %c0_30, %c0_31] : memref<4x8x8xf32, #tpu.memory_space<vmem>>, vector<1x8x8xf32>
    %46 = vector.shape_cast %45 : vector<1x8x8xf32> to vector<8x8xf32>
    %cst_32 = arith.constant dense<0.000000e+00> : vector<8x8xf32>
    %47 = tpu.matmul %46, %43, %cst_32 {dimension_numbers = #tpu.dot_dimension_numbers<[1], [1], [0], [0], [0, 0, 1, 0], [], []>} : vector<8x8xf32>, vector<8x8xf32>, vector<8x8xf32> -> vector<8x8xf32>
    %c1_33 = arith.constant 1 : index
    %c0_34 = arith.constant 0 : index
    %c0_35 = arith.constant 0 : index
    %48 = vector.load %arg11[%c1_33, %c0_34, %c0_35] : memref<4x8x1xf32, #tpu.memory_space<vmem>>, vector<1x8x1xf32>
    %49 = vector.shape_cast %48 : vector<1x8x1xf32> to vector<8x1xf32>
    %cst_36 = arith.constant dense<0xFF800000> : vector<8xf32>
    %50 = vector.multi_reduction <maximumf>, %47, %cst_36 [1] : vector<8x8xf32> to vector<8xf32>
    %51 = vector.shape_cast %50 : vector<8xf32> to vector<8x1xf32>
    %52 = arith.maximumf %49, %51 : vector<8x1xf32>
    %53 = arith.subf %49, %52 : vector<8x1xf32>
    %54 = math.exp %53 : vector<8x1xf32>
    %55 = vector.broadcast %52 : vector<8x1xf32> to vector<8x8xf32>
    %56 = arith.subf %47, %55 : vector<8x8xf32>
    %57 = math.exp %56 : vector<8x8xf32>
    %c1_37 = arith.constant 1 : index
    %c0_38 = arith.constant 0 : index
    %c0_39 = arith.constant 0 : index
    %58 = vector.load %arg12[%c1_37, %c0_38, %c0_39] : memref<4x8x1xf32, #tpu.memory_space<vmem>>, vector<1x8x1xf32>
    %59 = vector.shape_cast %58 : vector<1x8x1xf32> to vector<8x1xf32>
    %60 = arith.mulf %54, %59 : vector<8x1xf32>
    %cst_40 = arith.constant dense<0.000000e+00> : vector<8xf32>
    %61 = vector.multi_reduction <add>, %57, %cst_40 [1] : vector<8x8xf32> to vector<8xf32>
    %62 = vector.shape_cast %61 : vector<8xf32> to vector<8x1xf32>
    %63 = arith.addf %60, %62 : vector<8x1xf32>
    %c1_41 = arith.constant 1 : index
    %c0_42 = arith.constant 0 : index
    %c0_43 = arith.constant 0 : index
    %64 = vector.load %arg12[%c1_41, %c0_42, %c0_43] : memref<4x8x1xf32, #tpu.memory_space<vmem>>, vector<1x8x1xf32>
    %65 = vector.shape_cast %64 : vector<1x8x1xf32> to vector<8x1xf32>
    %66 = vector.shape_cast %63 : vector<8x1xf32> to vector<1x8x1xf32>
    tpu.vector_store %arg12[%c1_41, %c0_42, %c0_43], %66 {strides = array<i32>} : memref<4x8x1xf32, #tpu.memory_space<vmem>>, vector<1x8x1xf32>,
    %c1_44 = arith.constant 1 : index
    %c0_45 = arith.constant 0 : index
    %c0_46 = arith.constant 0 : index
    %67 = vector.load %arg13[%c1_44, %c0_45, %c0_46] : memref<4x8x8xf32, #tpu.memory_space<vmem>>, vector<1x8x8xf32>
    %68 = vector.shape_cast %67 : vector<1x8x8xf32> to vector<8x8xf32>
    %69 = vector.broadcast %54 : vector<8x1xf32> to vector<8x8xf32>
    %70 = arith.mulf %69, %68 : vector<8x8xf32>
    %cst_47 = arith.constant dense<0.000000e+00> : vector<8x8xf32>
    %71 = tpu.matmul %57, %44, %cst_47 {dimension_numbers = #tpu.dot_dimension_numbers<[1], [0], [0], [1], [0, 0, 1, 1], [], []>} : vector<8x8xf32>, vector<8x8xf32>, vector<8x8xf32> -> vector<8x8xf32>
    %72 = arith.addf %70, %71 : vector<8x8xf32>
    %c1_48 = arith.constant 1 : index
    %c0_49 = arith.constant 0 : index
    %c0_50 = arith.constant 0 : index
    %73 = vector.load %arg13[%c1_48, %c0_49, %c0_50] : memref<4x8x8xf32, #tpu.memory_space<vmem>>, vector<1x8x8xf32>
    %74 = vector.shape_cast %73 : vector<1x8x8xf32> to vector<8x8xf32>
    %75 = vector.shape_cast %72 : vector<8x8xf32> to vector<1x8x8xf32>
    tpu.vector_store %arg13[%c1_48, %c0_49, %c0_50], %75 {strides = array<i32>} : memref<4x8x8xf32, #tpu.memory_space<vmem>>, vector<1x8x8xf32>,
    %c1_51 = arith.constant 1 : index
    %c0_52 = arith.constant 0 : index
    %c0_53 = arith.constant 0 : index
    %76 = vector.load %arg11[%c1_51, %c0_52, %c0_53] : memref<4x8x1xf32, #tpu.memory_space<vmem>>, vector<1x8x1xf32>
    %77 = vector.shape_cast %76 : vector<1x8x1xf32> to vector<8x1xf32>
    %78 = vector.shape_cast %52 : vector<8x1xf32> to vector<1x8x1xf32>
    tpu.vector_store %arg11[%c1_51, %c0_52, %c0_53], %78 {strides = array<i32>} : memref<4x8x1xf32, #tpu.memory_space<vmem>>, vector<1x8x1xf32>,
    %79 = vector.extract_strided_slice %6 {offsets = [0, 16], sizes = [8, 8], strides = [1, 1]} : vector<8x64xf32> to vector<8x8xf32>
    %80 = vector.extract_strided_slice %6 {offsets = [0, 48], sizes = [8, 8], strides = [1, 1]} : vector<8x64xf32> to vector<8x8xf32>
    %c2 = arith.constant 2 : index
    %c0_54 = arith.constant 0 : index
    %c0_55 = arith.constant 0 : index
    %81 = vector.load %arg10[%c2, %c0_54, %c0_55] : memref<4x8x8xf32, #tpu.memory_space<vmem>>, vector<1x8x8xf32>
    %82 = vector.shape_cast %81 : vector<1x8x8xf32> to vector<8x8xf32>
    %cst_56 = arith.constant dense<0.000000e+00> : vector<8x8xf32>
    %83 = tpu.matmul %82, %79, %cst_56 {dimension_numbers = #tpu.dot_dimension_numbers<[1], [1], [0], [0], [0, 0, 1, 0], [], []>} : vector<8x8xf32>, vector<8x8xf32>, vector<8x8xf32> -> vector<8x8xf32>
    %c2_57 = arith.constant 2 : index
    %c0_58 = arith.constant 0 : index
    %c0_59 = arith.constant 0 : index
    %84 = vector.load %arg11[%c2_57, %c0_58, %c0_59] : memref<4x8x1xf32, #tpu.memory_space<vmem>>, vector<1x8x1xf32>
    %85 = vector.shape_cast %84 : vector<1x8x1xf32> to vector<8x1xf32>
    %cst_60 = arith.constant dense<0xFF800000> : vector<8xf32>
    %86 = vector.multi_reduction <maximumf>, %83, %cst_60 [1] : vector<8x8xf32> to vector<8xf32>
    %87 = vector.shape_cast %86 : vector<8xf32> to vector<8x1xf32>
    %88 = arith.maximumf %85, %87 : vector<8x1xf32>
    %89 = arith.subf %85, %88 : vector<8x1xf32>
    %90 = math.exp %89 : vector<8x1xf32>
    %91 = vector.broadcast %88 : vector<8x1xf32> to vector<8x8xf32>
    %92 = arith.subf %83, %91 : vector<8x8xf32>
    %93 = math.exp %92 : vector<8x8xf32>
    %c2_61 = arith.constant 2 : index
    %c0_62 = arith.constant 0 : index
    %c0_63 = arith.constant 0 : index
    %94 = vector.load %arg12[%c2_61, %c0_62, %c0_63] : memref<4x8x1xf32, #tpu.memory_space<vmem>>, vector<1x8x1xf32>
    %95 = vector.shape_cast %94 : vector<1x8x1xf32> to vector<8x1xf32>
    %96 = arith.mulf %90, %95 : vector<8x1xf32>
    %cst_64 = arith.constant dense<0.000000e+00> : vector<8xf32>
    %97 = vector.multi_reduction <add>, %93, %cst_64 [1] : vector<8x8xf32> to vector<8xf32>
    %98 = vector.shape_cast %97 : vector<8xf32> to vector<8x1xf32>
    %99 = arith.addf %96, %98 : vector<8x1xf32>
    %c2_65 = arith.constant 2 : index
    %c0_66 = arith.constant 0 : index
    %c0_67 = arith.constant 0 : index
    %100 = vector.load %arg12[%c2_65, %c0_66, %c0_67] : memref<4x8x1xf32, #tpu.memory_space<vmem>>, vector<1x8x1xf32>
    %101 = vector.shape_cast %100 : vector<1x8x1xf32> to vector<8x1xf32>
    %102 = vector.shape_cast %99 : vector<8x1xf32> to vector<1x8x1xf32>
    tpu.vector_store %arg12[%c2_65, %c0_66, %c0_67], %102 {strides = array<i32>} : memref<4x8x1xf32, #tpu.memory_space<vmem>>, vector<1x8x1xf32>,
    %c2_68 = arith.constant 2 : index
    %c0_69 = arith.constant 0 : index
    %c0_70 = arith.constant 0 : index
    %103 = vector.load %arg13[%c2_68, %c0_69, %c0_70] : memref<4x8x8xf32, #tpu.memory_space<vmem>>, vector<1x8x8xf32>
    %104 = vector.shape_cast %103 : vector<1x8x8xf32> to vector<8x8xf32>
    %105 = vector.broadcast %90 : vector<8x1xf32> to vector<8x8xf32>
    %106 = arith.mulf %105, %104 : vector<8x8xf32>
    %cst_71 = arith.constant dense<0.000000e+00> : vector<8x8xf32>
    %107 = tpu.matmul %93, %80, %cst_71 {dimension_numbers = #tpu.dot_dimension_numbers<[1], [0], [0], [1], [0, 0, 1, 1], [], []>} : vector<8x8xf32>, vector<8x8xf32>, vector<8x8xf32> -> vector<8x8xf32>
    %108 = arith.addf %106, %107 : vector<8x8xf32>
    %c2_72 = arith.constant 2 : index
    %c0_73 = arith.constant 0 : index
    %c0_74 = arith.constant 0 : index
    %109 = vector.load %arg13[%c2_72, %c0_73, %c0_74] : memref<4x8x8xf32, #tpu.memory_space<vmem>>, vector<1x8x8xf32>
    %110 = vector.shape_cast %109 : vector<1x8x8xf32> to vector<8x8xf32>
    %111 = vector.shape_cast %108 : vector<8x8xf32> to vector<1x8x8xf32>
    tpu.vector_store %arg13[%c2_72, %c0_73, %c0_74], %111 {strides = array<i32>} : memref<4x8x8xf32, #tpu.memory_space<vmem>>, vector<1x8x8xf32>,
    %c2_75 = arith.constant 2 : index
    %c0_76 = arith.constant 0 : index
    %c0_77 = arith.constant 0 : index
    %112 = vector.load %arg11[%c2_75, %c0_76, %c0_77] : memref<4x8x1xf32, #tpu.memory_space<vmem>>, vector<1x8x1xf32>
    %113 = vector.shape_cast %112 : vector<1x8x1xf32> to vector<8x1xf32>
    %114 = vector.shape_cast %88 : vector<8x1xf32> to vector<1x8x1xf32>
    tpu.vector_store %arg11[%c2_75, %c0_76, %c0_77], %114 {strides = array<i32>} : memref<4x8x1xf32, #tpu.memory_space<vmem>>, vector<1x8x1xf32>,
    %115 = vector.extract_strided_slice %6 {offsets = [0, 24], sizes = [8, 8], strides = [1, 1]} : vector<8x64xf32> to vector<8x8xf32>
    %116 = vector.extract_strided_slice %6 {offsets = [0, 56], sizes = [8, 8], strides = [1, 1]} : vector<8x64xf32> to vector<8x8xf32>
    %c3 = arith.constant 3 : index
    %c0_78 = arith.constant 0 : index
    %c0_79 = arith.constant 0 : index
    %117 = vector.load %arg10[%c3, %c0_78, %c0_79] : memref<4x8x8xf32, #tpu.memory_space<vmem>>, vector<1x8x8xf32>
    %118 = vector.shape_cast %117 : vector<1x8x8xf32> to vector<8x8xf32>
    %cst_80 = arith.constant dense<0.000000e+00> : vector<8x8xf32>
    %119 = tpu.matmul %118, %115, %cst_80 {dimension_numbers = #tpu.dot_dimension_numbers<[1], [1], [0], [0], [0, 0, 1, 0], [], []>} : vector<8x8xf32>, vector<8x8xf32>, vector<8x8xf32> -> vector<8x8xf32>
    %c3_81 = arith.constant 3 : index
    %c0_82 = arith.constant 0 : index
    %c0_83 = arith.constant 0 : index
    %120 = vector.load %arg11[%c3_81, %c0_82, %c0_83] : memref<4x8x1xf32, #tpu.memory_space<vmem>>, vector<1x8x1xf32>
    %121 = vector.shape_cast %120 : vector<1x8x1xf32> to vector<8x1xf32>
    %cst_84 = arith.constant dense<0xFF800000> : vector<8xf32>
    %122 = vector.multi_reduction <maximumf>, %119, %cst_84 [1] : vector<8x8xf32> to vector<8xf32>
    %123 = vector.shape_cast %122 : vector<8xf32> to vector<8x1xf32>
    %124 = arith.maximumf %121, %123 : vector<8x1xf32>
    %125 = arith.subf %121, %124 : vector<8x1xf32>
    %126 = math.exp %125 : vector<8x1xf32>
    %127 = vector.broadcast %124 : vector<8x1xf32> to vector<8x8xf32>
    %128 = arith.subf %119, %127 : vector<8x8xf32>
    %129 = math.exp %128 : vector<8x8xf32>
    %c3_85 = arith.constant 3 : index
    %c0_86 = arith.constant 0 : index
    %c0_87 = arith.constant 0 : index
    %130 = vector.load %arg12[%c3_85, %c0_86, %c0_87] : memref<4x8x1xf32, #tpu.memory_space<vmem>>, vector<1x8x1xf32>
    %131 = vector.shape_cast %130 : vector<1x8x1xf32> to vector<8x1xf32>
    %132 = arith.mulf %126, %131 : vector<8x1xf32>
    %cst_88 = arith.constant dense<0.000000e+00> : vector<8xf32>
    %133 = vector.multi_reduction <add>, %129, %cst_88 [1] : vector<8x8xf32> to vector<8xf32>
    %134 = vector.shape_cast %133 : vector<8xf32> to vector<8x1xf32>
    %135 = arith.addf %132, %134 : vector<8x1xf32>
    %c3_89 = arith.constant 3 : index
    %c0_90 = arith.constant 0 : index
    %c0_91 = arith.constant 0 : index
    %136 = vector.load %arg12[%c3_89, %c0_90, %c0_91] : memref<4x8x1xf32, #tpu.memory_space<vmem>>, vector<1x8x1xf32>
    %137 = vector.shape_cast %136 : vector<1x8x1xf32> to vector<8x1xf32>
    %138 = vector.shape_cast %135 : vector<8x1xf32> to vector<1x8x1xf32>
    tpu.vector_store %arg12[%c3_89, %c0_90, %c0_91], %138 {strides = array<i32>} : memref<4x8x1xf32, #tpu.memory_space<vmem>>, vector<1x8x1xf32>,
    %c3_92 = arith.constant 3 : index
    %c0_93 = arith.constant 0 : index
    %c0_94 = arith.constant 0 : index
    %139 = vector.load %arg13[%c3_92, %c0_93, %c0_94] : memref<4x8x8xf32, #tpu.memory_space<vmem>>, vector<1x8x8xf32>
    %140 = vector.shape_cast %139 : vector<1x8x8xf32> to vector<8x8xf32>
    %141 = vector.broadcast %126 : vector<8x1xf32> to vector<8x8xf32>
    %142 = arith.mulf %141, %140 : vector<8x8xf32>
    %cst_95 = arith.constant dense<0.000000e+00> : vector<8x8xf32>
    %143 = tpu.matmul %129, %116, %cst_95 {dimension_numbers = #tpu.dot_dimension_numbers<[1], [0], [0], [1], [0, 0, 1, 1], [], []>} : vector<8x8xf32>, vector<8x8xf32>, vector<8x8xf32> -> vector<8x8xf32>
    %144 = arith.addf %142, %143 : vector<8x8xf32>
    %c3_96 = arith.constant 3 : index
    %c0_97 = arith.constant 0 : index
    %c0_98 = arith.constant 0 : index
    %145 = vector.load %arg13[%c3_96, %c0_97, %c0_98] : memref<4x8x8xf32, #tpu.memory_space<vmem>>, vector<1x8x8xf32>
    %146 = vector.shape_cast %145 : vector<1x8x8xf32> to vector<8x8xf32>
    %147 = vector.shape_cast %144 : vector<8x8xf32> to vector<1x8x8xf32>
    tpu.vector_store %arg13[%c3_96, %c0_97, %c0_98], %147 {strides = array<i32>} : memref<4x8x8xf32, #tpu.memory_space<vmem>>, vector<1x8x8xf32>,
    %c3_99 = arith.constant 3 : index
    %c0_100 = arith.constant 0 : index
    %c0_101 = arith.constant 0 : index
    %148 = vector.load %arg11[%c3_99, %c0_100, %c0_101] : memref<4x8x1xf32, #tpu.memory_space<vmem>>, vector<1x8x1xf32>
    %149 = vector.shape_cast %148 : vector<1x8x1xf32> to vector<8x1xf32>
    %150 = vector.shape_cast %124 : vector<8x1xf32> to vector<1x8x1xf32>
    tpu.vector_store %arg11[%c3_99, %c0_100, %c0_101], %150 {strides = array<i32>} : memref<4x8x1xf32, #tpu.memory_space<vmem>>, vector<1x8x1xf32>,
    %c0_i32_102 = arith.constant 0 : i32
    %151 = arith.cmpi eq, %arg2, %c0_i32_102 : i32
    %152 = arith.extui %151 : i1 to i32
    %c0_i32_103 = arith.constant 0 : i32
    %153 = arith.cmpi ne, %152, %c0_i32_103 : i32
    scf.if %153 {
      %c0_104 = arith.constant 0 : index
      %c0_105 = arith.constant 0 : index
      %c0_106 = arith.constant 0 : index
      %154 = vector.load %arg13[%c0_104, %c0_105, %c0_106] : memref<4x8x8xf32, #tpu.memory_space<vmem>>, vector<1x8x8xf32>
      %155 = vector.shape_cast %154 : vector<1x8x8xf32> to vector<8x8xf32>
      %c0_107 = arith.constant 0 : index
      %c0_108 = arith.constant 0 : index
      %c0_109 = arith.constant 0 : index
      %156 = vector.load %arg12[%c0_107, %c0_108, %c0_109] : memref<4x8x1xf32, #tpu.memory_space<vmem>>, vector<1x8x1xf32>
      %157 = vector.shape_cast %156 : vector<1x8x1xf32> to vector<8x1xf32>
      %158 = tpu.reciprocal %157 {approx = true} : vector<8x1xf32> -> vector<8x1xf32>
      %159 = vector.broadcast %158 : vector<8x1xf32> to vector<8x8xf32>
      %160 = arith.mulf %155, %159 : vector<8x8xf32>
      %c1_110 = arith.constant 1 : index
      %c0_111 = arith.constant 0 : index
      %c0_112 = arith.constant 0 : index
      %161 = vector.load %arg13[%c1_110, %c0_111, %c0_112] : memref<4x8x8xf32, #tpu.memory_space<vmem>>, vector<1x8x8xf32>
      %162 = vector.shape_cast %161 : vector<1x8x8xf32> to vector<8x8xf32>
      %c1_113 = arith.constant 1 : index
      %c0_114 = arith.constant 0 : index
      %c0_115 = arith.constant 0 : index
      %163 = vector.load %arg12[%c1_113, %c0_114, %c0_115] : memref<4x8x1xf32, #tpu.memory_space<vmem>>, vector<1x8x1xf32>
      %164 = vector.shape_cast %163 : vector<1x8x1xf32> to vector<8x1xf32>
      %165 = tpu.reciprocal %164 {approx = true} : vector<8x1xf32> -> vector<8x1xf32>
      %166 = vector.broadcast %165 : vector<8x1xf32> to vector<8x8xf32>
      %167 = arith.mulf %162, %166 : vector<8x8xf32>
      %c2_116 = arith.constant 2 : index
      %c0_117 = arith.constant 0 : index
      %c0_118 = arith.constant 0 : index
      %168 = vector.load %arg13[%c2_116, %c0_117, %c0_118] : memref<4x8x8xf32, #tpu.memory_space<vmem>>, vector<1x8x8xf32>
      %169 = vector.shape_cast %168 : vector<1x8x8xf32> to vector<8x8xf32>
      %c2_119 = arith.constant 2 : index
      %c0_120 = arith.constant 0 : index
      %c0_121 = arith.constant 0 : index
      %170 = vector.load %arg12[%c2_119, %c0_120, %c0_121] : memref<4x8x1xf32, #tpu.memory_space<vmem>>, vector<1x8x1xf32>
      %171 = vector.shape_cast %170 : vector<1x8x1xf32> to vector<8x1xf32>
      %172 = tpu.reciprocal %171 {approx = true} : vector<8x1xf32> -> vector<8x1xf32>
      %173 = vector.broadcast %172 : vector<8x1xf32> to vector<8x8xf32>
      %174 = arith.mulf %169, %173 : vector<8x8xf32>
      %c3_122 = arith.constant 3 : index
      %c0_123 = arith.constant 0 : index
      %c0_124 = arith.constant 0 : index
      %175 = vector.load %arg13[%c3_122, %c0_123, %c0_124] : memref<4x8x8xf32, #tpu.memory_space<vmem>>, vector<1x8x8xf32>
      %176 = vector.shape_cast %175 : vector<1x8x8xf32> to vector<8x8xf32>
      %c3_125 = arith.constant 3 : index
      %c0_126 = arith.constant 0 : index
      %c0_127 = arith.constant 0 : index
      %177 = vector.load %arg12[%c3_125, %c0_126, %c0_127] : memref<4x8x1xf32, #tpu.memory_space<vmem>>, vector<1x8x1xf32>
      %178 = vector.shape_cast %177 : vector<1x8x1xf32> to vector<8x1xf32>
      %179 = tpu.reciprocal %178 {approx = true} : vector<8x1xf32> -> vector<8x1xf32>
      %180 = vector.broadcast %179 : vector<8x1xf32> to vector<8x8xf32>
      %181 = arith.mulf %176, %180 : vector<8x8xf32>
      %182 = tpu.concatenate %160, %167, %174, %181 in 1 : vector<8x8xf32>, vector<8x8xf32>, vector<8x8xf32>, vector<8x8xf32> -> vector<8x32xf32>
      %c0_128 = arith.constant 0 : index
      %c0_129 = arith.constant 0 : index
      %183 = vector.load %arg7[%c0_128, %c0_129] : memref<32x128xf32, #tpu.memory_space<vmem>>, vector<32x128xf32>
      %cst_130 = arith.constant dense<0.000000e+00> : vector<8x128xf32>
      %184 = tpu.matmul %182, %183, %cst_130 {dimension_numbers = #tpu.dot_dimension_numbers<[1], [0], [0], [1], [0, 0, 1, 1], [], []>} : vector<8x32xf32>, vector<32x128xf32>, vector<8x128xf32> -> vector<8x128xf32>
      %c0_131 = arith.constant 0 : index
      %c0_132 = arith.constant 0 : index
      %185 = vector.load %arg8[%c0_131, %c0_132] : memref<1x128xf32, #tpu.memory_space<vmem>>, vector<1x128xf32>
      %186 = vector.broadcast %185 : vector<1x128xf32> to vector<8x128xf32>
      %187 = arith.addf %184, %186 : vector<8x128xf32>
      %c0_133 = arith.constant 0 : index
      %c0_134 = arith.constant 0 : index
      %c0_135 = arith.constant 0 : index
      %188 = vector.load %arg9[%c0_133, %c0_134, %c0_135] : memref<1x8x128xf32, #tpu.memory_space<vmem>>, vector<1x8x128xf32>
      %189 = vector.shape_cast %188 : vector<1x8x128xf32> to vector<8x128xf32>
      %190 = vector.shape_cast %187 : vector<8x128xf32> to vector<1x8x128xf32>
      tpu.vector_store %arg9[%c0_133, %c0_134, %c0_135], %190 {strides = array<i32>} : memref<1x8x128xf32, #tpu.memory_space<vmem>>, vector<1x8x128xf32>,
    } else {
    }
    return
  }
  func.func @transform_0(%arg0: i32, %arg1: i32, %arg2: i32) -> (i32, i32, i32) {
    %c0_i32 = arith.constant 0 : i32
    %c0_i32_0 = arith.constant 0 : i32
    return %arg0, %arg1, %c0_i32 : i32, i32, i32
  }
  func.func @transform_1(%arg0: i32, %arg1: i32, %arg2: i32) -> (i32, i32, i32) {
    %c0_i32 = arith.constant 0 : i32
    %c0_i32_0 = arith.constant 0 : i32
    return %arg0, %arg2, %c0_i32 : i32, i32, i32
  }
  func.func @transform_2(%arg0: i32, %arg1: i32, %arg2: i32) -> (i32, i32) {
    %c0_i32 = arith.constant 0 : i32
    %c0_i32_0 = arith.constant 0 : i32
    %c0_i32_1 = arith.constant 0 : i32
    return %c0_i32, %c0_i32_0 : i32, i32
  }
  func.func @transform_3(%arg0: i32, %arg1: i32, %arg2: i32) -> (i32, i32) {
    %c0_i32 = arith.constant 0 : i32
    %c0_i32_0 = arith.constant 0 : i32
    %c0_i32_1 = arith.constant 0 : i32
    return %c0_i32, %c0_i32_0 : i32, i32
  }
  func.func @transform_4(%arg0: i32, %arg1: i32, %arg2: i32) -> (i32, i32) {
    %c0_i32 = arith.constant 0 : i32
    %c0_i32_0 = arith.constant 0 : i32
    %c0_i32_1 = arith.constant 0 : i32
    return %c0_i32, %c0_i32_0 : i32, i32
  }
  func.func @transform_5(%arg0: i32, %arg1: i32, %arg2: i32) -> (i32, i32) {
    %c0_i32 = arith.constant 0 : i32
    %c0_i32_0 = arith.constant 0 : i32
    %c0_i32_1 = arith.constant 0 : i32
    return %c0_i32, %c0_i32_0 : i32, i32
  }
  func.func @transform_6(%arg0: i32, %arg1: i32, %arg2: i32) -> (i32, i32, i32) {
    %c0_i32 = arith.constant 0 : i32
    %c0_i32_0 = arith.constant 0 : i32
    return %arg0, %arg1, %c0_i32 : i32, i32, i32
  }
}

</mosaic_0001>

<llo_original>
// kernel: tpu_custom_call.1
$region0: #{tpu_custom_call.1}
  #allocation0 [shape = 'u32[]', space=smem, size = 0x4, offset = 0x4, fixed_abs, tag = 'smem constant byte address 0x4 - core index']
  #allocation1 [shape = 'u32[72,128]{1,0:T(1,128)}', space=vmem, size = 0x9000, scoped, tag = 'internal scratch']
  #allocation2 [shape = 'f32[4,8,8]{2,1,0:T(8,128)}', space=vmem, size = 0x4000, scoped, tag = 'scratch operand']
  #allocation3 [shape = 'f32[4,8,1]{2,1,0:T(8,128)}', space=vmem, size = 0x4000, scoped, tag = 'scratch operand']
  #allocation4 [shape = 'f32[4,8,1]{2,1,0:T(8,128)}', space=vmem, size = 0x4000, scoped, tag = 'scratch operand']
  #allocation5 [shape = 'f32[4,8,8]{2,1,0:T(8,128)}', space=vmem, size = 0x4000, scoped, tag = 'scratch operand']
  %s0 = inlined_call_operand.hbm [shape: f32[2,8,32], index: 0, kind: input, shape index: {}]
  %s1 = inlined_call_operand.hbm [shape: f32[2,8,32], index: 1, kind: input, shape index: {}]
  %s2 = inlined_call_operand.hbm [shape: f32[32,32], index: 2, kind: input, shape index: {}]
  %s3 = inlined_call_operand.hbm [shape: f32[32,64], index: 3, kind: input, shape index: {}]
  %s4 = inlined_call_operand.hbm [shape: f32[32,128], index: 4, kind: input, shape index: {}]
  %s5 = inlined_call_operand.vmem [shape: f32[1,128], index: 5, kind: input, shape index: {}]
  %s6 = inlined_call_operand.hbm [shape: f32[2,8,128], index: 6, kind: output, shape index: {}]
  %s7 = sld [smem:[#allocation0]]
  $region85: #{tpu_custom_call.1} parent=0
    _
  %s9 = ssub.s32 1, %s7
  %s10 = scalar_select 0, %s9, %s7
  $region1: #{tpu_custom_call.1} parent=0
    #allocation6 [shape = 'u8[8192]{0}', space=vmem, size = 0x2000, scoped, tag = 'input window, operand 0']
    #allocation7 [shape = 's32[2]{0}', space=sflag, size = 0x8, scoped, tag = 'scoped memory for tpu_custom_call.1']
    #allocation8 [shape = 's32[2]{0}', space=sflag, size = 0x8, scoped, tag = 'scoped memory for tpu_custom_call.1']
    #allocation9 [shape = 'u8[8192]{0}', space=vmem, size = 0x2000, scoped, tag = 'input window, operand 1']
    #allocation10 [shape = 's32[2]{0}', space=sflag, size = 0x8, scoped, tag = 'scoped memory for tpu_custom_call.1']
    #allocation11 [shape = 'u8[16384]{0}', space=vmem, size = 0x4000, scoped, tag = 'input window, operand 2, single buffered']
    #allocation12 [shape = 'u8[16384]{0}', space=vmem, size = 0x4000, scoped, tag = 'input window, operand 3, single buffered']
    #allocation13 [shape = 's32[1]{0}', space=sflag, size = 0x4, scoped, tag = 'scoped memory for tpu_custom_call.1']
    #allocation14 [shape = 'u8[16384]{0}', space=vmem, size = 0x4000, scoped, tag = 'input window, operand 4, single buffered']
    #allocation15 [shape = 'u8[8192]{0}', space=vmem, size = 0x2000, scoped, tag = 'output window, operand 0']
    %11 = vsyncpa [#allocation7], 0
    %s12 = scalar_lea.sflag [#allocation7], 1
    %13 = vsyncpa %s12, 0
    %14 = vsyncpa [#allocation10], 0
    %s15 = scalar_lea.sflag [#allocation10], 1
    %16 = vsyncpa %s15, 0
    %17 = vsyncpa [#allocation13], 0
    %18 = vsyncpa [#allocation8], 0
    %s19 = scalar_lea.sflag [#allocation8], 1
    %20 = vsyncpa %s19, 0
    loop: start=0, step=1, limit=4
    $region2: #{tpu_custom_call.1} parent=1 // loop_pre_header
      _
    $region3: #{tpu_custom_call.1} parent=1 // loop_header
      %s22 = sphi 0, %s26
      %p23 = scmp.ge.s32.totalorder %s22, 4
      %s29 = sphi 0, %s48
      %s30 = sphi 0, %s44
      %s31 = sphi 0, %s40
      %s32 = sphi 0, %s29
      %s33 = sphi 0, %s30
      %s34 = sphi 0, %s31
      %s35 = sphi 0, %s32
      %s36 = sphi 0, %s33
      %s37 = sphi 0, %s34
      %s53 = sphi 0, %s55
      %s56 = sphi 0, %s53
      %s57 = sphi 0, %s56
      %s73 = sphi 0, %s57
      %s81 = sphi 0, %s83
      %s84 = sphi 0, %s81
      %s85 = sphi 0, %s84
      %s101 = sphi 0, %s85
      %s105 = sphi 0, %s105
      %s107 = sphi 0, %s105
      %s108 = sphi 0, %s107
      %s122 = sphi 0, %s108
      %s126 = sphi 0, %s126
      %s128 = sphi 0, %s126
      %s129 = sphi 0, %s128
      %s143 = sphi 0, %s129
      %s147 = sphi 0, %s147
      %s149 = sphi 0, %s147
      %s150 = sphi 0, %s149
      %s164 = sphi 0, %s150
      %s168 = sphi 0, %s168
      %s170 = sphi 0, %s168
      %s171 = sphi 0, %s170
      %s185 = sphi 0, %s171
      %s193 = sphi 0, %s195
      %s196 = sphi 0, %s193
      %s197 = sphi 0, %s196
      %s213 = sphi 0, %s197
    $region4: #{tpu_custom_call.1} parent=1 // loop_header_branch
      %25 = sbr.rel (%p23) target = $region8
    $region5: #{tpu_custom_call.1} parent=1 // loop_body
      %s27 = ssub.s32 %s22, 1
      %s28 = ssub.s32 %s22, 2
      %s38 = sadd.s32 1, %s31
      %p39 = scmp.ge.s32.totalorder %s38, 1
      %s40 = scalar_select %p39, 0, %s38
      %s41 = sadd.s32 1, %s30
      %s42 = scalar_select %p39, %s41, %s30
      %p43 = scmp.ge.s32.totalorder %s42, 1
      %s44 = scalar_select %p43, 0, %s42
      %s45 = sadd.s32 1, %s29
      %s46 = scalar_select %p43, %s45, %s29
      %p47 = scmp.ge.s32.totalorder %s46, 2
      %s48 = scalar_select %p47, 0, %s46
      %s49 = ssub.s32 %s29, %s48
      %s50 = ssub.s32 %s30, %s44
      %s51 = sor.u32 %s49, %s50
      %p52 = scmp.eq.s32.totalorder %s51, 0
      %s54 = sadd.s32 %s53, 1
      %s55 = scalar_select %p52, %s53, %s54
      %p58 = pneg %p52
      %p59 = scmp.eq.s32.totalorder %s22, 1
      %p60 = por %p58, %p59
      %p61 = scmp.ne.s32.totalorder %s53, %s56
      %p62 = scmp.eq.s32.totalorder %s22, 0
      %p63 = por %p61, %p62
      %p64 = scmp.ne.s32.totalorder %s53, %s56
      %p65 = scmp.eq.s32.totalorder %s27, 1
      %p66 = por %p64, %p65
      %p67 = scmp.ne.s32.totalorder %s56, %s57
      %p68 = scmp.eq.s32.totalorder %s27, 0
      %p69 = por %p67, %p68
      %p70 = scmp.ne.s32.totalorder %s56, %s57
      %p71 = scmp.eq.s32.totalorder %s28, 1
      %p72 = por %p70, %p71
      %p74 = scmp.ne.s32.totalorder %s57, %s73
      %p75 = scmp.eq.s32.totalorder %s28, 0
      %p76 = por %p74, %p75
      %s77 = ssub.s32 %s29, %s48
      %s78 = ssub.s32 %s31, %s40
      %s79 = sor.u32 %s77, %s78
      %p80 = scmp.eq.s32.totalorder %s79, 0
      %s82 = sadd.s32 %s81, 1
      %s83 = scalar_select %p80, %s81, %s82
      %p86 = pneg %p80
      %p87 = scmp.eq.s32.totalorder %s22, 1
      %p88 = por %p86, %p87
      %p89 = scmp.ne.s32.totalorder %s81, %s84
      %p90 = scmp.eq.s32.totalorder %s22, 0
      %p91 = por %p89, %p90
      %p92 = scmp.ne.s32.totalorder %s81, %s84
      %p93 = scmp.eq.s32.totalorder %s27, 1
      %p94 = por %p92, %p93
      %p95 = scmp.ne.s32.totalorder %s84, %s85
      %p96 = scmp.eq.s32.totalorder %s27, 0
      %p97 = por %p95, %p96
      %p98 = scmp.ne.s32.totalorder %s84, %s85
      %p99 = scmp.eq.s32.totalorder %s28, 1
      %p100 = por %p98, %p99
      %p102 = scmp.ne.s32.totalorder %s85, %s101
      %p103 = scmp.eq.s32.totalorder %s28, 0
      %p104 = por %p102, %p103
      %s106 = sadd.s32 %s105, 1
      %p109 = scmp.eq.s32.totalorder %s22, 1
      %p110 = scmp.ne.s32.totalorder %s105, %s107
      %p111 = scmp.eq.s32.totalorder %s22, 0
      %p112 = por %p110, %p111
      %p113 = scmp.ne.s32.totalorder %s105, %s107
      %p114 = scmp.eq.s32.totalorder %s27, 1
      %p115 = por %p113, %p114
      %p116 = scmp.ne.s32.totalorder %s107, %s108
      %p117 = scmp.eq.s32.totalorder %s27, 0
      %p118 = por %p116, %p117
      %p119 = scmp.ne.s32.totalorder %s107, %s108
      %p120 = scmp.eq.s32.totalorder %s28, 1
      %p121 = por %p119, %p120
      %p123 = scmp.ne.s32.totalorder %s108, %s122
      %p124 = scmp.eq.s32.totalorder %s28, 0
      %p125 = por %p123, %p124
      %s127 = sadd.s32 %s126, 1
      %p130 = scmp.eq.s32.totalorder %s22, 1
      %p131 = scmp.ne.s32.totalorder %s126, %s128
      %p132 = scmp.eq.s32.totalorder %s22, 0
      %p133 = por %p131, %p132
      %p134 = scmp.ne.s32.totalorder %s126, %s128
      %p135 = scmp.eq.s32.totalorder %s27, 1
      %p136 = por %p134, %p135
      %p137 = scmp.ne.s32.totalorder %s128, %s129
      %p138 = scmp.eq.s32.totalorder %s27, 0
      %p139 = por %p137, %p138
      %p140 = scmp.ne.s32.totalorder %s128, %s129
      %p141 = scmp.eq.s32.totalorder %s28, 1
      %p142 = por %p140, %p141
      %p144 = scmp.ne.s32.totalorder %s129, %s143
      %p145 = scmp.eq.s32.totalorder %s28, 0
      %p146 = por %p144, %p145
      %s148 = sadd.s32 %s147, 1
      %p151 = scmp.eq.s32.totalorder %s22, 1
      %p152 = scmp.ne.s32.totalorder %s147, %s149
      %p153 = scmp.eq.s32.totalorder %s22, 0
      %p154 = por %p152, %p153
      %p155 = scmp.ne.s32.totalorder %s147, %s149
      %p156 = scmp.eq.s32.totalorder %s27, 1
      %p157 = por %p155, %p156
      %p158 = scmp.ne.s32.totalorder %s149, %s150
      %p159 = scmp.eq.s32.totalorder %s27, 0
      %p160 = por %p158, %p159
      %p161 = scmp.ne.s32.totalorder %s149, %s150
      %p162 = scmp.eq.s32.totalorder %s28, 1
      %p163 = por %p161, %p162
      %p165 = scmp.ne.s32.totalorder %s150, %s164
      %p166 = scmp.eq.s32.totalorder %s28, 0
      %p167 = por %p165, %p166
      %s169 = sadd.s32 %s168, 1
      %p172 = scmp.eq.s32.totalorder %s22, 1
      %p173 = scmp.ne.s32.totalorder %s168, %s170
      %p174 = scmp.eq.s32.totalorder %s22, 0
      %p175 = por %p173, %p174
      %p176 = scmp.ne.s32.totalorder %s168, %s170
      %p177 = scmp.eq.s32.totalorder %s27, 1
      %p178 = por %p176, %p177
      %p179 = scmp.ne.s32.totalorder %s170, %s171
      %p180 = scmp.eq.s32.totalorder %s27, 0
      %p181 = por %p179, %p180
      %p182 = scmp.ne.s32.totalorder %s170, %s171
      %p183 = scmp.eq.s32.totalorder %s28, 1
      %p184 = por %p182, %p183
      %p186 = scmp.ne.s32.totalorder %s171, %s185
      %p187 = scmp.eq.s32.totalorder %s28, 0
      %p188 = por %p186, %p187
      %s189 = ssub.s32 %s29, %s48
      %s190 = ssub.s32 %s30, %s44
      %s191 = sor.u32 %s189, %s190
      %p192 = scmp.eq.s32.totalorder %s191, 0
      %s194 = sadd.s32 %s193, 1
      %s195 = scalar_select %p192, %s193, %s194
      %p198 = pneg %p192
      %p199 = scmp.eq.s32.totalorder %s22, 1
      %p200 = por %p198, %p199
      %p201 = scmp.ne.s32.totalorder %s193, %s196
      %p202 = scmp.eq.s32.totalorder %s22, 0
      %p203 = por %p201, %p202
      %p204 = scmp.ne.s32.totalorder %s193, %s196
      %p205 = scmp.eq.s32.totalorder %s27, 1
      %p206 = por %p204, %p205
      %p207 = scmp.ne.s32.totalorder %s196, %s197
      %p208 = scmp.eq.s32.totalorder %s27, 0
      %p209 = por %p207, %p208
      %p210 = scmp.ne.s32.totalorder %s196, %s197
      %p211 = scmp.eq.s32.totalorder %s28, 1
      %p212 = por %p210, %p211
      %p214 = scmp.ne.s32.totalorder %s197, %s213
      %p215 = scmp.eq.s32.totalorder %s28, 0
      %p216 = por %p214, %p215
      %p217 = scmp.le.s32.totalorder 1, %s22
      %p218 = scmp.lt.s32.totalorder %s22, 3
      %p219 = pnand %p217, %p218
      %p220 = pneg %p219
      // Predicated region
      $region9: #{tpu_custom_call.1} parent=5 // pred_check
        _
      $region10: #{tpu_custom_call.1} parent=5 // pred_check_branch
        %222 = sbr.rel (%p219) target = $region12
      $region11: #{tpu_custom_call.1} parent=5 // pred_region
        %s223 = ssub.s32 %s22, 1
        // Predicated region
        $region13: #{tpu_custom_call.1} parent=11 // pred_check
          %p224 = pneg %p118
        $region14: #{tpu_custom_call.1} parent=11 // pred_check_branch
          %226 = sbr.rel (%p224) target = $region16
        $region15: #{tpu_custom_call.1} parent=11 // pred_region
          %228 = vsyncadd [#allocation10], 0
          %s229 = sshll.u32 %s2, 4
          %s230 = int_to_ptr.hbm [resolvable:$true] %s229
          %s231 = sshll.u32 [#allocation11], 4
          %s232 = int_to_ptr.vmem [resolvable:$true] %s231
          %237 = dma.hbm_to_vmem [thread:$0]  %s230, 512, %s232, [#allocation10], 128, 128, 8
        $region16: #{tpu_custom_call.1} parent=11 // pred_fallthru
          _
        // Predicated region
        $region17: #{tpu_custom_call.1} parent=11 // pred_check
          %p238 = pneg %p139
        $region18: #{tpu_custom_call.1} parent=11 // pred_check_branch
          %240 = sbr.rel (%p238) target = $region20
        $region19: #{tpu_custom_call.1} parent=11 // pred_region
          %242 = vsyncadd [#allocation13], 0
          %s243 = sshll.u32 %s3, 4
          %s244 = int_to_ptr.hbm [resolvable:$true] %s243
          %s245 = sshll.u32 [#allocation12], 4
          %s246 = int_to_ptr.vmem [resolvable:$true] %s245
          %251 = dma.hbm_to_vmem [thread:$0]  %s244, 512, %s246, [#allocation13], 128, 128, 8
        $region20: #{tpu_custom_call.1} parent=11 // pred_fallthru
          _
        // Predicated region
        $region21: #{tpu_custom_call.1} parent=11 // pred_check
          %p252 = pneg %p160
        $region22: #{tpu_custom_call.1} parent=11 // pred_check_branch
          %254 = sbr.rel (%p252) target = $region24
        $region23: #{tpu_custom_call.1} parent=11 // pred_region
          %256 = vsyncadd [#allocation13], 0
          %s257 = sshll.u32 %s4, 4
          %s258 = int_to_ptr.hbm [resolvable:$true] %s257
          %s259 = sshll.u32 [#allocation14], 4
          %s260 = int_to_ptr.vmem [resolvable:$true] %s259
          %265 = dma.hbm_to_vmem [thread:$0]  %s258, 512, %s260, [#allocation13], 128, 128, 8
        $region24: #{tpu_custom_call.1} parent=11 // pred_fallthru
          _
        // Predicated region
        $region25: #{tpu_custom_call.1} parent=11 // pred_check
          %p266 = pneg %p181
        $region26: #{tpu_custom_call.1} parent=11 // pred_check_branch
          %268 = sbr.rel (%p266) target = $region28
        $region27: #{tpu_custom_call.1} parent=11 // pred_region
          _
        $region28: #{tpu_custom_call.1} parent=11 // pred_fallthru
          _
      $region12: #{tpu_custom_call.1} parent=5 // pred_fallthru
        _
      %p269 = scmp.lt.s32.totalorder %s22, 2
      // Predicated region
      $region29: #{tpu_custom_call.1} parent=5 // pred_check
        %p270 = pneg %p269
      $region30: #{tpu_custom_call.1} parent=5 // pred_check_branch
        %272 = sbr.rel (%p270) target = $region32
      $region31: #{tpu_custom_call.1} parent=5 // pred_region
        // Predicated region
        $region33: #{tpu_custom_call.1} parent=31 // pred_check
          %p273 = pneg %p63
        $region34: #{tpu_custom_call.1} parent=31 // pred_check_branch
          %275 = sbr.rel (%p273) target = $region36
        $region35: #{tpu_custom_call.1} parent=31 // pred_region
          %s276 = sand.u32 %s53, 1
          %s277 = scalar_lea.sflag [#allocation7], %s276
          %s278 = sand.u32 %s53, 1
          %s279 = smul.addr %s278, 8
          %s280 = scalar_lea.vmem [#allocation6], %s279
          %282 = vsyncadd %s277, 0
          %s283 = sadd.s32 %s30, %s29
          %s284 = smul.addr %s283, 8
          %s285 = scalar_lea.hbm %s0, %s284
          %s287 = sshll.u32 %s285, 4
          %s288 = int_to_ptr.hbm [resolvable:$true] %s287
          %s289 = sshll.u32 %s280, 4
          %s290 = int_to_ptr.vmem [resolvable:$true] %s289
          %292 = dma.hbm_to_vmem [thread:$0]  %s288, 128, %s290, %s277
        $region36: #{tpu_custom_call.1} parent=31 // pred_fallthru
          _
        // Predicated region
        $region37: #{tpu_custom_call.1} parent=31 // pred_check
          %p293 = pneg %p91
        $region38: #{tpu_custom_call.1} parent=31 // pred_check_branch
          %295 = sbr.rel (%p293) target = $region40
        $region39: #{tpu_custom_call.1} parent=31 // pred_region
          %s296 = sand.u32 %s22, 1
          %s297 = scalar_lea.sflag [#allocation10], %s296
          %s298 = sand.u32 %s81, 1
          %s299 = smul.addr %s298, 8
          %s300 = scalar_lea.vmem [#allocation9], %s299
          %302 = vsyncadd %s297, 0
          %s303 = sadd.s32 %s31, %s29
          %s304 = smul.addr %s303, 8
          %s305 = scalar_lea.hbm %s1, %s304
          %s307 = sshll.u32 %s305, 4
          %s308 = int_to_ptr.hbm [resolvable:$true] %s307
          %s309 = sshll.u32 %s300, 4
          %s310 = int_to_ptr.vmem [resolvable:$true] %s309
          %312 = dma.hbm_to_vmem [thread:$0]  %s308, 128, %s310, %s297
        $region40: #{tpu_custom_call.1} parent=31 // pred_fallthru
          _
      $region32: #{tpu_custom_call.1} parent=5 // pred_fallthru
        _
      %p313 = scmp.le.s32.totalorder 1, %s22
      %p314 = scmp.lt.s32.totalorder %s22, 3
      %p315 = pnand %p313, %p314
      %p316 = pneg %p315
      // Predicated region
      $region41: #{tpu_custom_call.1} parent=5 // pred_check
        _
      $region42: #{tpu_custom_call.1} parent=5 // pred_check_branch
        %318 = sbr.rel (%p315) target = $region44
      $region43: #{tpu_custom_call.1} parent=5 // pred_region
        %s319 = ssub.s32 %s22, 1
        %s320 = sand.u32 %s56, 1
        %s321 = scalar_lea.sflag [#allocation7], %s320
        %s322 = sand.u32 %s56, 1
        %s323 = smul.addr %s322, 8
        %s324 = scalar_lea.vmem [#allocation6], %s323
        // Predicated region
        $region45: #{tpu_custom_call.1} parent=43 // pred_check
          %p325 = pneg %p69
        $region46: #{tpu_custom_call.1} parent=43 // pred_check_branch
          %327 = sbr.rel (%p325) target = $region48
        $region47: #{tpu_custom_call.1} parent=43 // pred_region
          %329 = dma.done %s321, 128
        $region48: #{tpu_custom_call.1} parent=43 // pred_fallthru
          _
        %s330 = sand.u32 %s27, 1
        %s331 = scalar_lea.sflag [#allocation10], %s330
        %s332 = sand.u32 %s84, 1
        %s333 = smul.addr %s332, 8
        %s334 = scalar_lea.vmem [#allocation9], %s333
        // Predicated region
        $region49: #{tpu_custom_call.1} parent=43 // pred_check
          %p335 = pneg %p97
        $region50: #{tpu_custom_call.1} parent=43 // pred_check_branch
          %337 = sbr.rel (%p335) target = $region52
        $region51: #{tpu_custom_call.1} parent=43 // pred_region
          %339 = dma.done %s331, 128
        $region52: #{tpu_custom_call.1} parent=43 // pred_fallthru
          _
        // Predicated region
        $region53: #{tpu_custom_call.1} parent=43 // pred_check
          %p340 = pneg %p118
        $region54: #{tpu_custom_call.1} parent=43 // pred_check_branch
          %342 = sbr.rel (%p340) target = $region56
        $region55: #{tpu_custom_call.1} parent=43 // pred_region
          %344 = dma.done [#allocation10], 512
        $region56: #{tpu_custom_call.1} parent=43 // pred_fallthru
          _
        // Predicated region
        $region57: #{tpu_custom_call.1} parent=43 // pred_check
          %p345 = pneg %p139
        $region58: #{tpu_custom_call.1} parent=43 // pred_check_branch
          %347 = sbr.rel (%p345) target = $region60
        $region59: #{tpu_custom_call.1} parent=43 // pred_region
          %349 = dma.done [#allocation13], 512
        $region60: #{tpu_custom_call.1} parent=43 // pred_fallthru
          _
        // Predicated region
        $region61: #{tpu_custom_call.1} parent=43 // pred_check
          %p350 = pneg %p160
        $region62: #{tpu_custom_call.1} parent=43 // pred_check_branch
          %352 = sbr.rel (%p350) target = $region64
        $region63: #{tpu_custom_call.1} parent=43 // pred_region
          %354 = dma.done [#allocation13], 512
        $region64: #{tpu_custom_call.1} parent=43 // pred_fallthru
          _
        %s355 = sand.u32 %s56, 1
        %s356 = scalar_lea.sflag [#allocation7], %s355
        %s357 = sand.u32 %s56, 1
        %s358 = smul.addr %s357, 8
        %s359 = scalar_lea.vmem [#allocation6], %s358
        %p360 = pneg %p69
        %p361 = pneg %p66
        %s362 = sand.u32 %s27, 1
        %s363 = scalar_lea.sflag [#allocation10], %s362
        %s364 = sand.u32 %s84, 1
        %s365 = smul.addr %s364, 8
        %s366 = scalar_lea.vmem [#allocation9], %s365
        %p367 = pneg %p97
        %p368 = pneg %p94
        %p369 = pneg %p118
        %p370 = pneg %p115
        %p371 = pneg %p139
        %p372 = pneg %p136
        %p373 = pneg %p160
        %p374 = pneg %p157
        %p375 = pneg %p181
        %p376 = pneg %p178
        %p377 = pneg %p209
        %p378 = pneg %p206
        %s379 = sand.u32 %s196, 1
        %s380 = scalar_lea.sflag [#allocation8], %s379
        %s381 = sand.u32 %s196, 1
        %s382 = smul.addr %s381, 8
        %s383 = scalar_lea.vmem [#allocation15], %s382
        %p384 = scmp.eq.s32.totalorder %s34, 0
        // Predicated region
        $region65: #{tpu_custom_call.1} parent=43 // pred_check
          %p385 = pneg %p384
        $region66: #{tpu_custom_call.1} parent=43 // pred_check_branch
          %387 = sbr.rel (%p385) target = $region68
        $region67: #{tpu_custom_call.1} parent=43 // pred_region
          %v388 = vld [vmem:[%s324] sm:$0xff]
          %v389 = vld [vmem:[#allocation11] sm:$0xff]
          %v390 = vld [vmem:[#allocation11 + $0x8] sm:$0xff]
          %v391 = vld [vmem:[#allocation11 + $0x10] sm:$0xff]
          %v392 = vld [vmem:[#allocation11 + $0x18] sm:$0xff]
          %vm393 = vcmask 261120
          %v395 = vsel %vm393, %v388, 0
          %397 = vmatpush.msra.mxu0 0.0
          %398 = vmatpush.msra.mxu0 0.0
          %399 = vmatpush.msra.mxu0 0.0
          %400 = vmatpush.msra.mxu0 0.0
          %401 = vmatpush.msra.mxu0 0.0
          %402 = vmatpush.msra.mxu0 0.0
          %403 = vmatpush.msra.mxu0 0.0
          %404 = vmatpush.msra.mxu0 0.0
          %405 = vmatpush.msra.mxu0 0.0
          %406 = vmatpush.msra.mxu0 0.0
          %407 = vmatpush.msra.mxu0 0.0
          %408 = vmatpush.msra.mxu0 0.0
          %409 = vmatpush.msra.mxu0 %v392
          %410 = vmatpush.msra.mxu0 %v391
          %411 = vmatpush.msra.mxu0 %v390
          %412 = vmatpush.msra.mxu0 %v389
          %413 = vmatmul.f32.gmra.mxu0 %v395
          %v414 = vpop.f32.mrf.mxu0
          %v415 = vadd.f32 0.0, %v414
          %416 = vdwg.mxu0
          %vm417 = vcmask 64512
          %418 = vst.msk [vmem:[#allocation2] sm:$0xff] %vm417, %v415
          %420 = vrot.lane.b32.xlu0 %v415, 120
          %v421 = vpop.permute.xlu0 %420
          %s423 = scalar_lea.vmem [#allocation2], 8
          %424 = vst.msk [vmem:[%s423] sm:$0xff] %vm417, %v421
          %425 = vrot.lane.b32.xlu0 %v415, 112
          %v426 = vpop.permute.xlu0 %425
          %s428 = scalar_lea.vmem [#allocation2], 16
          %429 = vst.msk [vmem:[%s428] sm:$0xff] %vm417, %v426
          %430 = vrot.lane.b32.xlu0 %v415, 104
          %v431 = vpop.permute.xlu0 %430
          %s433 = scalar_lea.vmem [#allocation2], 24
          %434 = vst.msk [vmem:[%s433] sm:$0xff] %vm417, %v431
          %vm435 = vcmask 7168
          %436 = vst.msk [vmem:[#allocation3] sm:$0xff] %vm435, -inf
          %437 = vst.msk [vmem:[#allocation3 + $0x8] sm:$0xff] %vm435, -inf
          %438 = vst.msk [vmem:[#allocation3 + $0x10] sm:$0xff] %vm435, -inf
          %439 = vst.msk [vmem:[#allocation3 + $0x18] sm:$0xff] %vm435, -inf
          %440 = vst.msk [vmem:[#allocation4] sm:$0xff] %vm435, 0.0
          %441 = vst.msk [vmem:[#allocation4 + $0x8] sm:$0xff] %vm435, 0.0
          %442 = vst.msk [vmem:[#allocation4 + $0x10] sm:$0xff] %vm435, 0.0
          %443 = vst.msk [vmem:[#allocation4 + $0x18] sm:$0xff] %vm435, 0.0
          %444 = vst.msk [vmem:[#allocation5] sm:$0xff] %vm417, 0.0
          %445 = vst.msk [vmem:[#allocation5 + $0x8] sm:$0xff] %vm417, 0.0
          %446 = vst.msk [vmem:[#allocation5 + $0x10] sm:$0xff] %vm417, 0.0
          %447 = vst.msk [vmem:[#allocation5 + $0x18] sm:$0xff] %vm417, 0.0
        $region68: #{tpu_custom_call.1} parent=43 // pred_fallthru
          _
        %v448 = vld [vmem:[%s334] sm:$0xff]
        %v449 = vld [vmem:[#allocation12] sm:$0xff]
        %v450 = vld [vmem:[#allocation12 + $0x8] sm:$0xff]
        %v451 = vld [vmem:[#allocation12 + $0x10] sm:$0xff]
        %v452 = vld [vmem:[#allocation12 + $0x18] sm:$0xff]
        %vm453 = vcmask 261120
        %v455 = vsel %vm453, %v448, 0
        %457 = vmatpush.msra.mxu0 0.0
        %458 = vmatpush.msra.mxu0 0.0
        %459 = vmatpush.msra.mxu0 0.0
        %460 = vmatpush.msra.mxu0 0.0
        %461 = vmatpush.msra.mxu0 0.0
        %462 = vmatpush.msra.mxu0 0.0
        %463 = vmatpush.msra.mxu0 0.0
        %464 = vmatpush.msra.mxu0 0.0
        %465 = vmatpush.msra.mxu0 0.0
        %466 = vmatpush.msra.mxu0 0.0
        %467 = vmatpush.msra.mxu0 0.0
        %468 = vmatpush.msra.mxu0 0.0
        %469 = vmatpush.msra.mxu0 %v452
        %470 = vmatpush.msra.mxu0 %v451
        %471 = vmatpush.msra.mxu0 %v450
        %472 = vmatpush.msra.mxu0 %v449
        %473 = vmatmul.f32.gmra.mxu0 %v455
        %v474 = vpop.f32.mrf.mxu0
        %v475 = vadd.f32 0.0, %v474
        %476 = vdwg.mxu0
        %v477 = vld [vmem:[#allocation2] sm:$0xff]
        %vm478 = vcmask 64512
        %v480 = vsel %vm478, %v477, 0
        %v483 = vsel %vm478, %v475, 0
        %485 = vmatpush.xpose.msra.mxu0 0.0
        %486 = vmatpush.xpose.msra.mxu0 0.0
        %487 = vmatpush.xpose.msra.mxu0 0.0
        %488 = vmatpush.xpose.msra.mxu0 0.0
        %489 = vmatpush.xpose.msra.mxu0 0.0
        %490 = vmatpush.xpose.msra.mxu0 0.0
        %491 = vmatpush.xpose.msra.mxu0 0.0
        %492 = vmatpush.xpose.msra.mxu0 0.0
        %493 = vmatpush.xpose.msra.mxu0 0.0
        %494 = vmatpush.xpose.msra.mxu0 0.0
        %495 = vmatpush.xpose.msra.mxu0 0.0
        %496 = vmatpush.xpose.msra.mxu0 0.0
        %497 = vmatpush.xpose.msra.mxu0 0.0
        %498 = vmatpush.xpose.msra.mxu0 0.0
        %499 = vmatpush.xpose.msra.mxu0 0.0
        %500 = vmatpush.xpose.msra.mxu0 %v483
        %501 = vmatmul.f32.gmra.mxu0 %v480
        %v502 = vpop.f32.mrf.mxu0
        %v503 = vadd.f32 0.0, %v502
        %504 = vdwg.mxu0
        %v505 = vld [vmem:[#allocation3] sm:$0xff]
        %v506 = vsel %vm478, %v503, -inf
        %507 = vmax.xlane.f32.xlu0 %v506
        %v508 = vpop.xlane.xlu0 %507
        %v509 = vmax.f32 %v505, %v508
        %v510 = vsub.f32 %v505, %v509
        %v511 = vmul.f32 %v510, 1.442695
        %v512 = vpow.pop %v511
        %514 = vset.pattern.permute.xlu0 0
        %515 = vperm.xlu0 %514, %v509
        %v516 = vpop.permute.xlu0 %515
        %v518 = vsub.f32 %v503, %v516
        %v519 = vmul.f32 %v518, 1.442695
        %v520 = vpow.pop %v519
        %v521 = vld [vmem:[#allocation4] sm:$0xff]
        %v522 = vmul.f32 %v512, %v521
        %v523 = vsel %vm478, %v520, 0.0
        %524 = vadd.xlane.f32.xlu0 %v523
        %v525 = vpop.xlane.xlu0 %524
        %v526 = vadd.f32 %v522, %v525
        %vm527 = vcmask 7168
        %528 = vst.msk [vmem:[#allocation4] sm:$0xff] %vm527, %v526
        %v529 = vld [vmem:[#allocation5] sm:$0xff]
        %531 = vset.pattern.permute.xlu0 0
        %532 = vperm.xlu0 %531, %v512
        %v533 = vpop.permute.xlu0 %532
        %v535 = vmul.f32 %v533, %v529
        %536 = vrot.lane.b32.xlu0 %v475, 96
        %v537 = vpop.permute.xlu0 %536
        %v540 = vsel %vm478, %v520, 0
        %542 = vmatpush.msra.mxu0 0.0
        %543 = vmatpush.msra.mxu0 0.0
        %544 = vmatpush.msra.mxu0 0.0
        %545 = vmatpush.msra.mxu0 0.0
        %546 = vmatpush.msra.mxu0 0.0
        %547 = vmatpush.msra.mxu0 0.0
        %548 = vmatpush.msra.mxu0 0.0
        %549 = vmatpush.msra.mxu0 0.0
        %550 = vmatpush.msra.mxu0 0.0
        %551 = vmatpush.msra.mxu0 0.0
        %552 = vmatpush.msra.mxu0 0.0
        %553 = vmatpush.msra.mxu0 0.0
        %554 = vmatpush.msra.mxu0 0.0
        %555 = vmatpush.msra.mxu0 0.0
        %556 = vmatpush.msra.mxu0 0.0
        %557 = vmatpush.msra.mxu0 %v537
        %558 = vmatmul.f32.gmra.mxu0 %v540
        %v559 = vpop.f32.mrf.mxu0
        %v560 = vadd.f32 0.0, %v559
        %561 = vdwg.mxu0
        %v562 = vadd.f32 %v535, %v560
        %563 = vst.msk [vmem:[#allocation5] sm:$0xff] %vm478, %v562
        %564 = vst.msk [vmem:[#allocation3] sm:$0xff] %vm527, %v509
        %s565 = scalar_lea.vmem [#allocation2], 8
        %v566 = vld [vmem:[%s565] sm:$0xff]
        %567 = vrot.lane.b32.xlu0 %v475, 120
        %v568 = vpop.permute.xlu0 %567
        %v570 = vsel %vm478, %v566, 0
        %v572 = vsel %vm478, %v568, 0
        %574 = vmatpush.xpose.msra.mxu0 0.0
        %575 = vmatpush.xpose.msra.mxu0 0.0
        %576 = vmatpush.xpose.msra.mxu0 0.0
        %577 = vmatpush.xpose.msra.mxu0 0.0
        %578 = vmatpush.xpose.msra.mxu0 0.0
        %579 = vmatpush.xpose.msra.mxu0 0.0
        %580 = vmatpush.xpose.msra.mxu0 0.0
        %581 = vmatpush.xpose.msra.mxu0 0.0
        %582 = vmatpush.xpose.msra.mxu0 0.0
        %583 = vmatpush.xpose.msra.mxu0 0.0
        %584 = vmatpush.xpose.msra.mxu0 0.0
        %585 = vmatpush.xpose.msra.mxu0 0.0
        %586 = vmatpush.xpose.msra.mxu0 0.0
        %587 = vmatpush.xpose.msra.mxu0 0.0
        %588 = vmatpush.xpose.msra.mxu0 0.0
        %589 = vmatpush.xpose.msra.mxu0 %v572
        %590 = vmatmul.f32.gmra.mxu0 %v570
        %v591 = vpop.f32.mrf.mxu0
        %v592 = vadd.f32 0.0, %v591
        %593 = vdwg.mxu0
        %s594 = scalar_lea.vmem [#allocation3], 8
        %v595 = vld [vmem:[%s594] sm:$0xff]
        %v596 = vsel %vm478, %v592, -inf
        %597 = vmax.xlane.f32.xlu0 %v596
        %v598 = vpop.xlane.xlu0 %597
        %v599 = vmax.f32 %v595, %v598
        %v600 = vsub.f32 %v595, %v599
        %v601 = vmul.f32 %v600, 1.442695
        %v602 = vpow.pop %v601
        %604 = vset.pattern.permute.xlu0 0
        %605 = vperm.xlu0 %604, %v599
        %v606 = vpop.permute.xlu0 %605
        %v608 = vsub.f32 %v592, %v606
        %v609 = vmul.f32 %v608, 1.442695
        %v610 = vpow.pop %v609
        %s611 = scalar_lea.vmem [#allocation4], 8
        %v612 = vld [vmem:[%s611] sm:$0xff]
        %v613 = vmul.f32 %v602, %v612
        %v614 = vsel %vm478, %v610, 0.0
        %615 = vadd.xlane.f32.xlu0 %v614
        %v616 = vpop.xlane.xlu0 %615
        %v617 = vadd.f32 %v613, %v616
        %618 = vst.msk [vmem:[%s611] sm:$0xff] %vm527, %v617
        %s619 = scalar_lea.vmem [#allocation5], 8
        %v620 = vld [vmem:[%s619] sm:$0xff]
        %622 = vset.pattern.permute.xlu0 0
        %623 = vperm.xlu0 %622, %v602
        %v624 = vpop.permute.xlu0 %623
        %v626 = vmul.f32 %v624, %v620
        %627 = vrot.lane.b32.xlu0 %v475, 88
        %v628 = vpop.permute.xlu0 %627
        %v631 = vsel %vm478, %v610, 0
        %633 = vmatpush.msra.mxu0 0.0
        %634 = vmatpush.msra.mxu0 0.0
        %635 = vmatpush.msra.mxu0 0.0
        %636 = vmatpush.msra.mxu0 0.0
        %637 = vmatpush.msra.mxu0 0.0
        %638 = vmatpush.msra.mxu0 0.0
        %639 = vmatpush.msra.mxu0 0.0
        %640 = vmatpush.msra.mxu0 0.0
        %641 = vmatpush.msra.mxu0 0.0
        %642 = vmatpush.msra.mxu0 0.0
        %643 = vmatpush.msra.mxu0 0.0
        %644 = vmatpush.msra.mxu0 0.0
        %645 = vmatpush.msra.mxu0 0.0
        %646 = vmatpush.msra.mxu0 0.0
        %647 = vmatpush.msra.mxu0 0.0
        %648 = vmatpush.msra.mxu0 %v628
        %649 = vmatmul.f32.gmra.mxu0 %v631
        %v650 = vpop.f32.mrf.mxu0
        %v651 = vadd.f32 0.0, %v650
        %652 = vdwg.mxu0
        %v653 = vadd.f32 %v626, %v651
        %654 = vst.msk [vmem:[%s619] sm:$0xff] %vm478, %v653
        %655 = vst.msk [vmem:[%s594] sm:$0xff] %vm527, %v599
        %s656 = scalar_lea.vmem [#allocation2], 16
        %v657 = vld [vmem:[%s656] sm:$0xff]
        %658 = vrot.lane.b32.xlu0 %v475, 112
        %v659 = vpop.permute.xlu0 %658
        %v661 = vsel %vm478, %v657, 0
        %v663 = vsel %vm478, %v659, 0
        %665 = vmatpush.xpose.msra.mxu0 0.0
        %666 = vmatpush.xpose.msra.mxu0 0.0
        %667 = vmatpush.xpose.msra.mxu0 0.0
        %668 = vmatpush.xpose.msra.mxu0 0.0
        %669 = vmatpush.xpose.msra.mxu0 0.0
        %670 = vmatpush.xpose.msra.mxu0 0.0
        %671 = vmatpush.xpose.msra.mxu0 0.0
        %672 = vmatpush.xpose.msra.mxu0 0.0
        %673 = vmatpush.xpose.msra.mxu0 0.0
        %674 = vmatpush.xpose.msra.mxu0 0.0
        %675 = vmatpush.xpose.msra.mxu0 0.0
        %676 = vmatpush.xpose.msra.mxu0 0.0
        %677 = vmatpush.xpose.msra.mxu0 0.0
        %678 = vmatpush.xpose.msra.mxu0 0.0
        %679 = vmatpush.xpose.msra.mxu0 0.0
        %680 = vmatpush.xpose.msra.mxu0 %v663
        %681 = vmatmul.f32.gmra.mxu0 %v661
        %v682 = vpop.f32.mrf.mxu0
        %v683 = vadd.f32 0.0, %v682
        %684 = vdwg.mxu0
        %s685 = scalar_lea.vmem [#allocation3], 16
        %v686 = vld [vmem:[%s685] sm:$0xff]
        %v687 = vsel %vm478, %v683, -inf
        %688 = vmax.xlane.f32.xlu0 %v687
        %v689 = vpop.xlane.xlu0 %688
        %v690 = vmax.f32 %v686, %v689
        %v691 = vsub.f32 %v686, %v690
        %v692 = vmul.f32 %v691, 1.442695
        %v693 = vpow.pop %v692
        %695 = vset.pattern.permute.xlu0 0
        %696 = vperm.xlu0 %695, %v690
        %v697 = vpop.permute.xlu0 %696
        %v699 = vsub.f32 %v683, %v697
        %v700 = vmul.f32 %v699, 1.442695
        %v701 = vpow.pop %v700
        %s702 = scalar_lea.vmem [#allocation4], 16
        %v703 = vld [vmem:[%s702] sm:$0xff]
        %v704 = vmul.f32 %v693, %v703
        %v705 = vsel %vm478, %v701, 0.0
        %706 = vadd.xlane.f32.xlu0 %v705
        %v707 = vpop.xlane.xlu0 %706
        %v708 = vadd.f32 %v704, %v707
        %709 = vst.msk [vmem:[%s702] sm:$0xff] %vm527, %v708
        %s710 = scalar_lea.vmem [#allocation5], 16
        %v711 = vld [vmem:[%s710] sm:$0xff]
        %713 = vset.pattern.permute.xlu0 0
        %714 = vperm.xlu0 %713, %v693
        %v715 = vpop.permute.xlu0 %714
        %v717 = vmul.f32 %v715, %v711
        %718 = vrot.lane.b32.xlu0 %v475, 80
        %v719 = vpop.permute.xlu0 %718
        %v722 = vsel %vm478, %v701, 0
        %724 = vmatpush.msra.mxu0 0.0
        %725 = vmatpush.msra.mxu0 0.0
        %726 = vmatpush.msra.mxu0 0.0
        %727 = vmatpush.msra.mxu0 0.0
        %728 = vmatpush.msra.mxu0 0.0
        %729 = vmatpush.msra.mxu0 0.0
        %730 = vmatpush.msra.mxu0 0.0
        %731 = vmatpush.msra.mxu0 0.0
        %732 = vmatpush.msra.mxu0 0.0
        %733 = vmatpush.msra.mxu0 0.0
        %734 = vmatpush.msra.mxu0 0.0
        %735 = vmatpush.msra.mxu0 0.0
        %736 = vmatpush.msra.mxu0 0.0
        %737 = vmatpush.msra.mxu0 0.0
        %738 = vmatpush.msra.mxu0 0.0
        %739 = vmatpush.msra.mxu0 %v719
        %740 = vmatmul.f32.gmra.mxu0 %v722
        %v741 = vpop.f32.mrf.mxu0
        %v742 = vadd.f32 0.0, %v741
        %743 = vdwg.mxu0
        %v744 = vadd.f32 %v717, %v742
        %745 = vst.msk [vmem:[%s710] sm:$0xff] %vm478, %v744
        %746 = vst.msk [vmem:[%s685] sm:$0xff] %vm527, %v690
        %s747 = scalar_lea.vmem [#allocation2], 24
        %v748 = vld [vmem:[%s747] sm:$0xff]
        %749 = vrot.lane.b32.xlu0 %v475, 104
        %v750 = vpop.permute.xlu0 %749
        %v752 = vsel %vm478, %v748, 0
        %v754 = vsel %vm478, %v750, 0
        %756 = vmatpush.xpose.msra.mxu0 0.0
        %757 = vmatpush.xpose.msra.mxu0 0.0
        %758 = vmatpush.xpose.msra.mxu0 0.0
        %759 = vmatpush.xpose.msra.mxu0 0.0
        %760 = vmatpush.xpose.msra.mxu0 0.0
        %761 = vmatpush.xpose.msra.mxu0 0.0
        %762 = vmatpush.xpose.msra.mxu0 0.0
        %763 = vmatpush.xpose.msra.mxu0 0.0
        %764 = vmatpush.xpose.msra.mxu0 0.0
        %765 = vmatpush.xpose.msra.mxu0 0.0
        %766 = vmatpush.xpose.msra.mxu0 0.0
        %767 = vmatpush.xpose.msra.mxu0 0.0
        %768 = vmatpush.xpose.msra.mxu0 0.0
        %769 = vmatpush.xpose.msra.mxu0 0.0
        %770 = vmatpush.xpose.msra.mxu0 0.0
        %771 = vmatpush.xpose.msra.mxu0 %v754
        %772 = vmatmul.f32.gmra.mxu0 %v752
        %v773 = vpop.f32.mrf.mxu0
        %v774 = vadd.f32 0.0, %v773
        %775 = vdwg.mxu0
        %s776 = scalar_lea.vmem [#allocation3], 24
        %v777 = vld [vmem:[%s776] sm:$0xff]
        %v778 = vsel %vm478, %v774, -inf
        %779 = vmax.xlane.f32.xlu0 %v778
        %v780 = vpop.xlane.xlu0 %779
        %v781 = vmax.f32 %v777, %v780
        %v782 = vsub.f32 %v777, %v781
        %v783 = vmul.f32 %v782, 1.442695
        %v784 = vpow.pop %v783
        %786 = vset.pattern.permute.xlu0 0
        %787 = vperm.xlu0 %786, %v781
        %v788 = vpop.permute.xlu0 %787
        %v790 = vsub.f32 %v774, %v788
        %v791 = vmul.f32 %v790, 1.442695
        %v792 = vpow.pop %v791
        %s793 = scalar_lea.vmem [#allocation4], 24
        %v794 = vld [vmem:[%s793] sm:$0xff]
        %v795 = vmul.f32 %v784, %v794
        %v796 = vsel %vm478, %v792, 0.0
        %797 = vadd.xlane.f32.xlu0 %v796
        %v798 = vpop.xlane.xlu0 %797
        %v799 = vadd.f32 %v795, %v798
        %800 = vst.msk [vmem:[%s793] sm:$0xff] %vm527, %v799
        %s801 = scalar_lea.vmem [#allocation5], 24
        %v802 = vld [vmem:[%s801] sm:$0xff]
        %804 = vset.pattern.permute.xlu0 0
        %805 = vperm.xlu0 %804, %v784
        %v806 = vpop.permute.xlu0 %805
        %v808 = vmul.f32 %v806, %v802
        %809 = vrot.lane.b32.xlu0 %v475, 72
        %v810 = vpop.permute.xlu0 %809
        %v813 = vsel %vm478, %v792, 0
        %815 = vmatpush.msra.mxu0 0.0
        %816 = vmatpush.msra.mxu0 0.0
        %817 = vmatpush.msra.mxu0 0.0
        %818 = vmatpush.msra.mxu0 0.0
        %819 = vmatpush.msra.mxu0 0.0
        %820 = vmatpush.msra.mxu0 0.0
        %821 = vmatpush.msra.mxu0 0.0
        %822 = vmatpush.msra.mxu0 0.0
        %823 = vmatpush.msra.mxu0 0.0
        %824 = vmatpush.msra.mxu0 0.0
        %825 = vmatpush.msra.mxu0 0.0
        %826 = vmatpush.msra.mxu0 0.0
        %827 = vmatpush.msra.mxu0 0.0
        %828 = vmatpush.msra.mxu0 0.0
        %829 = vmatpush.msra.mxu0 0.0
        %830 = vmatpush.msra.mxu0 %v810
        %831 = vmatmul.f32.gmra.mxu0 %v813
        %v832 = vpop.f32.mrf.mxu0
        %v833 = vadd.f32 0.0, %v832
        %834 = vdwg.mxu0
        %v835 = vadd.f32 %v808, %v833
        %836 = vst.msk [vmem:[%s801] sm:$0xff] %vm478, %v835
        %837 = vst.msk [vmem:[%s776] sm:$0xff] %vm527, %v781
        // Predicated region
        $region69: #{tpu_custom_call.1} parent=43 // pred_check
          %p838 = pneg %p384
        $region70: #{tpu_custom_call.1} parent=43 // pred_check_branch
          %840 = sbr.rel (%p838) target = $region72
        $region71: #{tpu_custom_call.1} parent=43 // pred_region
          %v841 = vld [vmem:[#allocation5] sm:$0xff]
          %v842 = vld [vmem:[#allocation4] sm:$0xff]
          %v843 = vrcp.pop %v842
          %845 = vset.pattern.permute.xlu0 0
          %846 = vperm.xlu0 %845, %v843
          %v847 = vpop.permute.xlu0 %846
          %v849 = vmul.f32 %v841, %v847
          %v850 = vld [vmem:[%s619] sm:$0xff]
          %v851 = vld [vmem:[%s611] sm:$0xff]
          %v852 = vrcp.pop %v851
          %854 = vset.pattern.permute.xlu0 0
          %855 = vperm.xlu0 %854, %v852
          %v856 = vpop.permute.xlu0 %855
          %v858 = vmul.f32 %v850, %v856
          %v859 = vld [vmem:[%s710] sm:$0xff]
          %v860 = vld [vmem:[%s702] sm:$0xff]
          %v861 = vrcp.pop %v860
          %863 = vset.pattern.permute.xlu0 0
          %864 = vperm.xlu0 %863, %v861
          %v865 = vpop.permute.xlu0 %864
          %v867 = vmul.f32 %v859, %v865
          %v868 = vld [vmem:[%s801] sm:$0xff]
          %v869 = vld [vmem:[%s793] sm:$0xff]
          %v870 = vrcp.pop %v869
          %872 = vset.pattern.permute.xlu0 0
          %873 = vperm.xlu0 %872, %v870
          %v874 = vpop.permute.xlu0 %873
          %v876 = vmul.f32 %v868, %v874
          %878 = vrot.lane.b32.xlu0 %v858, 8
          %v879 = vpop.permute.xlu0 %878
          %882 = vrot.lane.b32.xlu0 %v867, 16
          %v883 = vpop.permute.xlu0 %882
          %886 = vrot.lane.b32.xlu0 %v876, 24
          %v887 = vpop.permute.xlu0 %886
          %v889 = vsel %vm478, %v849, %v879
          %vm890 = vcmask 130048
          %v891 = vsel %vm890, %v889, %v883
          %vm892 = vcmask 195584
          %v893 = vsel %vm892, %v891, %v887
          %v894 = vld [vmem:[#allocation14] sm:$0xff]
          %v895 = vld [vmem:[#allocation14 + $0x8] sm:$0xff]
          %v896 = vld [vmem:[#allocation14 + $0x10] sm:$0xff]
          %v897 = vld [vmem:[#allocation14 + $0x18] sm:$0xff]
          %v898 = vld [vmem:[%s5] sm:$0x1]
          %v900 = vperm.slane %v898, 0
          %v903 = vsel %vm453, %v893, 0
          %905 = vmatpush.msra.mxu0 0.0
          %906 = vmatpush.msra.mxu0 0.0
          %907 = vmatpush.msra.mxu0 0.0
          %908 = vmatpush.msra.mxu0 0.0
          %909 = vmatpush.msra.mxu0 0.0
          %910 = vmatpush.msra.mxu0 0.0
          %911 = vmatpush.msra.mxu0 0.0
          %912 = vmatpush.msra.mxu0 0.0
          %913 = vmatpush.msra.mxu0 0.0
          %914 = vmatpush.msra.mxu0 0.0
          %915 = vmatpush.msra.mxu0 0.0
          %916 = vmatpush.msra.mxu0 0.0
          %917 = vmatpush.msra.mxu0 %v897
          %918 = vmatpush.msra.mxu0 %v896
          %919 = vmatpush.msra.mxu0 %v895
          %920 = vmatpush.msra.mxu0 %v894
          %921 = vmatmul.f32.gmra.mxu0 %v903
          %v922 = vpop.f32.mrf.mxu0
          %v923 = vadd.f32 %v900, %v922
          %924 = vdwg.mxu0
          %925 = vst [vmem:[%s383] sm:$0xff] %v923
        $region72: #{tpu_custom_call.1} parent=43 // pred_fallthru
          _
        %s926 = sand.u32 %s196, 1
        %s927 = scalar_lea.sflag [#allocation8], %s926
        %s928 = sand.u32 %s196, 1
        %s929 = smul.addr %s928, 8
        %s930 = scalar_lea.vmem [#allocation15], %s929
        // Predicated region
        $region73: #{tpu_custom_call.1} parent=43 // pred_check
          %p931 = pneg %p206
        $region74: #{tpu_custom_call.1} parent=43 // pred_check_branch
          %933 = sbr.rel (%p931) target = $region76
        $region75: #{tpu_custom_call.1} parent=43 // pred_region
          %935 = vsyncadd %s927, 0
          %s936 = sadd.s32 %s33, %s32
          %s937 = smul.addr %s936, 8
          %s938 = scalar_lea.hbm %s6, %s937
          %s940 = sshll.u32 %s930, 4
          %s941 = int_to_ptr.vmem [resolvable:$true] %s940
          %s942 = sshll.u32 %s938, 4
          %s943 = int_to_ptr.hbm [resolvable:$true] %s942
          %945 = dma.vmem_to_hbm [thread:$0]  %s941, 128, %s943, %s927
        $region76: #{tpu_custom_call.1} parent=43 // pred_fallthru
          _
      $region44: #{tpu_custom_call.1} parent=5 // pred_fallthru
        _
      %p946 = scmp.le.s32.totalorder 2, %s22
      // Predicated region
      $region77: #{tpu_custom_call.1} parent=5 // pred_check
        %p947 = pneg %p946
      $region78: #{tpu_custom_call.1} parent=5 // pred_check_branch
        %949 = sbr.rel (%p947) target = $region80
      $region79: #{tpu_custom_call.1} parent=5 // pred_region
        %s950 = ssub.s32 %s22, 2
        // Predicated region
        $region81: #{tpu_custom_call.1} parent=79 // pred_check
          %p951 = pneg %p212
        $region82: #{tpu_custom_call.1} parent=79 // pred_check_branch
          %953 = sbr.rel (%p951) target = $region84
        $region83: #{tpu_custom_call.1} parent=79 // pred_region
          %s954 = sand.u32 %s197, 1
          %s955 = scalar_lea.sflag [#allocation8], %s954
          %s956 = sand.u32 %s197, 1
          %s957 = smul.addr %s956, 8
          %s958 = scalar_lea.vmem [#allocation15], %s957
          %960 = dma.done %s955, 128
        $region84: #{tpu_custom_call.1} parent=79 // pred_fallthru
          _
      $region80: #{tpu_custom_call.1} parent=5 // pred_fallthru
        _
    $region6: #{tpu_custom_call.1} parent=1 // loop_footer
      %s26 = sadd.s32 1, %s22
    $region7: #{tpu_custom_call.1} parent=1 // loop_footer_branch
      %21 = sbr.rel target = $region3
    $region8: #{tpu_custom_call.1} parent=1 // loop_exit
      _
    %961 = vsyncpa [#allocation7], 1
    %s962 = scalar_lea.sflag [#allocation7], 1
    %963 = vsyncpa %s962, 1
    %964 = vsyncpa [#allocation10], 1
    %s965 = scalar_lea.sflag [#allocation10], 1
    %966 = vsyncpa %s965, 1
    %967 = vsyncpa [#allocation13], 1
    %968 = vsyncpa [#allocation8], 1
    %s969 = scalar_lea.sflag [#allocation8], 1
    %970 = vsyncpa %s969, 1

</llo_original>
